<compile_context>
chip_gen: v7x
topology: tpu7x:2x2x1
jax: 0.10.0
libtpu: 0.0.40
codegen_flags: <defaults>
</compile_context>

<pallas_src>
import functools

import jax
import jax.numpy as jnp
from jax.experimental import pallas as pl
from jax.experimental.pallas import tpu as pltpu


# Scoped-VMEM budget: above the scoped default but below v7x's 64 MiB physical
# VMEM so double-buffered weight/activation tiles always fit.
VMEM_LIMIT = 48 * 1024 * 1024


def _pick_tile(dim, target, aligns=(8,)):
    """Largest tile <= target that divides `dim` and is aligned to one of `aligns`
    (tried in order, so 256-aligned MXU tiles are preferred over 128 on v6e).
    Falls back to the full dim for small (toy-config) dims so blocks satisfy the
    (8, 128)/full-dim constraint."""
    if dim <= target:
        return dim
    for align in aligns:
        t = (target // align) * align
        while t >= align:
            if dim % t == 0:
                return t
            t -= align
    return dim


# ------------------------- tiled matmul (+bias, +act) ------------------------

def _matmul_bias_kernel(x_ref, w_ref, b_ref, o_ref, acc_ref, *, act):
    @pl.when(pl.program_id(2) == 0)
    def _():
        acc_ref[...] = jnp.zeros_like(acc_ref)

    acc_ref[...] += jnp.dot(x_ref[...], w_ref[...],
                            preferred_element_type=jnp.float32)

    @pl.when(pl.program_id(2) == pl.num_programs(2) - 1)
    def _():
        y = acc_ref[...] + b_ref[...]
        if act == "gelu":   # exact (erf) gelu, as in BERT
            y = 0.5 * y * (1.0 + jax.lax.erf(y * 0.7071067811865476))
        elif act == "tanh":
            y = jnp.tanh(y)
        o_ref[...] = y.astype(o_ref.dtype)


def fused_linear(x, w, b, act="none"):
    """o = act(x @ w + b); x bf16 (M,K), w bf16 (K,N), b f32 (N,) -> bf16 (M,N)."""
    M, K = x.shape
    N = w.shape[1]
    tm = _pick_tile(M, 512, aligns=(8,))
    tn = _pick_tile(N, 768, aligns=(256, 128))   # 256-aligned MXU tiles (v6e/v7x)
    tk = _pick_tile(K, 768, aligns=(256, 128))
    grid = (M // tm, N // tn, K // tk)
    return pl.pallas_call(
        functools.partial(_matmul_bias_kernel, act=act),
        out_shape=jax.ShapeDtypeStruct((M, N), jnp.bfloat16),
        grid_spec=pltpu.PrefetchScalarGridSpec(
            num_scalar_prefetch=0,
            grid=grid,
            in_specs=[pl.BlockSpec((tm, tk), lambda i, j, k: (i, k)),
                      pl.BlockSpec((tk, tn), lambda i, j, k: (k, j)),
                      pl.BlockSpec((1, tn), lambda i, j, k: (0, j))],
            out_specs=pl.BlockSpec((tm, tn), lambda i, j, k: (i, j)),
            scratch_shapes=[pltpu.VMEM((tm, tn), jnp.float32)]),
        compiler_params=pltpu.CompilerParams(
            dimension_semantics=("parallel", "parallel", "arbitrary"),
            vmem_limit_bytes=VMEM_LIMIT),
    )(x, w, b.reshape(1, N))


# ------------------------------- attention -----------------------------------

def _attention_kernel(qkv_ref, bias_ref, o_ref, *, nH, dh, scale):
    """One batch: fused-QKV slab in, batched multi-head attention, one (S, H)
    lane-dense context store out."""
    H = nH * dh
    qkv = qkv_ref[0]                              # (S, 3H) bf16: [q | k | v] lanes
    # Head-major stacks (nH, S, dh): the QK^T and PV matmuls become a single
    # batched MXU call each instead of nH tiny (S,dh)x(dh,S) dots.
    q = jnp.stack([qkv[:, h * dh:(h + 1) * dh] for h in range(nH)], axis=0)
    k = jnp.stack([qkv[:, H + h * dh:H + (h + 1) * dh] for h in range(nH)], axis=0)
    v = jnp.stack([qkv[:, 2 * H + h * dh:2 * H + (h + 1) * dh] for h in range(nH)],
                  axis=0)
    # Fold 1/sqrt(dh) into q (nH*S*dh muls instead of nH*S*S after the matmul).
    q = q * scale
    s = jnp.einsum('hqd,hkd->hqk', q, k,
                   preferred_element_type=jnp.float32)        # (nH, S, S) f32
    # Additive mask bias (1, S): added once, broadcast over heads & query rows.
    s = s + bias_ref[0]
    s = s - jnp.max(s, axis=-1, keepdims=True)
    p = jnp.exp(s)
    inv = pl.reciprocal(jnp.sum(p, axis=-1, keepdims=True), approx=True)
    ctx = jnp.einsum('hqk,hkd->hqd', p.astype(jnp.bfloat16), v,
                     preferred_element_type=jnp.float32) * inv  # (nH, S, dh)
    # Re-assemble heads along lanes -> ONE full-width, lane-dense (S, H) store.
    ctx = jnp.concatenate([ctx[h] for h in range(nH)], axis=-1)
    o_ref[0] = ctx.astype(o_ref.dtype)


def attention(qkv, attn_bias, nH, dh, scale):
    B, S, H3 = qkv.shape
    H = H3 // 3
    # TODO(synk): at bert-base shapes add a query-tile (flash-style) grid axis so
    #             v7x's 2 TensorCores get more than B parallel steps.
    return pl.pallas_call(
        functools.partial(_attention_kernel, nH=nH, dh=dh, scale=scale),
        out_shape=jax.ShapeDtypeStruct((B, S, H), jnp.bfloat16),
        grid=(B,),
        in_specs=[pl.BlockSpec((1, S, H3), lambda b: (b, 0, 0)),
                  pl.BlockSpec((1, 1, S), lambda b: (b, 0, 0))],
        out_specs=pl.BlockSpec((1, S, H), lambda b: (b, 0, 0)),
        compiler_params=pltpu.CompilerParams(
            dimension_semantics=("parallel",),
            vmem_limit_bytes=VMEM_LIMIT),
    )(qkv, attn_bias)


# ----------------- fused attn-out projection + residual + LN -----------------

def _proj_add_ln_kernel(ctx_ref, res_ref, w_ref, b_ref, g_ref, be_ref, o_ref, *, eps):
    y = jnp.dot(ctx_ref[...], w_ref[...], preferred_element_type=jnp.float32)
    x = y + b_ref[...] + res_ref[...].astype(jnp.float32)
    mu = jnp.mean(x, axis=-1, keepdims=True)
    var = jnp.mean((x - mu) ** 2, axis=-1, keepdims=True)
    o_ref[...] = ((x - mu) * jax.lax.rsqrt(var + eps) * g_ref[...]
                  + be_ref[...]).astype(o_ref.dtype)


def proj_add_ln(ctx, res, w, b, g, be, eps=1e-12):
    M, H = ctx.shape
    tm = _pick_tile(M, 512, aligns=(8,))
    row_spec = pl.BlockSpec((tm, H), lambda i: (i, 0))
    vec_spec = pl.BlockSpec((1, H), lambda i: (0, 0))
    return pl.pallas_call(
        functools.partial(_proj_add_ln_kernel, eps=eps),
        out_shape=jax.ShapeDtypeStruct((M, H), jnp.bfloat16),
        grid=(M // tm,),
        in_specs=[row_spec, row_spec,
                  pl.BlockSpec((H, H), lambda i: (0, 0)),
                  vec_spec, vec_spec, vec_spec],
        out_specs=row_spec,
        compiler_params=pltpu.CompilerParams(
            dimension_semantics=("parallel",),
            vmem_limit_bytes=VMEM_LIMIT),
    )(ctx, res, w, b.reshape(1, H), g.reshape(1, H), be.reshape(1, H))


# ------------------- fused FFN (gelu) + FFN2 + residual + LN -----------------

def _ffn_add_ln_kernel(x_ref, w1_ref, b1_ref, w2_ref, b2_ref, g_ref, be_ref,
                       o_ref, *, eps):
    x = x_ref[...]                                             # bf16 (tm, H)
    h1 = jnp.dot(x, w1_ref[...], preferred_element_type=jnp.float32) + b1_ref[...]
    h1 = 0.5 * h1 * (1.0 + jax.lax.erf(h1 * 0.7071067811865476))   # exact gelu, f32
    h2 = jnp.dot(h1.astype(jnp.bfloat16), w2_ref[...],
                 preferred_element_type=jnp.float32) + b2_ref[...]
    y = h2 + x.astype(jnp.float32)
    mu = jnp.mean(y, axis=-1, keepdims=True)
    var = jnp.mean((y - mu) ** 2, axis=-1, keepdims=True)
    o_ref[...] = ((y - mu) * jax.lax.rsqrt(var + eps) * g_ref[...]
                  + be_ref[...]).astype(o_ref.dtype)


def ffn_add_ln(x, w1, b1, w2, b2, g, be, eps=1e-12):
    M, H = x.shape
    F = w1.shape[1]
    tm = _pick_tile(M, 512, aligns=(8,))   # bf16 weights + f32 tiles fit 48 MiB budget
    row_spec = pl.BlockSpec((tm, H), lambda i: (i, 0))
    return pl.pallas_call(
        functools.partial(_ffn_add_ln_kernel, eps=eps),
        out_shape=jax.ShapeDtypeStruct((M, H), jnp.bfloat16),
        grid=(M // tm,),
        in_specs=[row_spec,
                  pl.BlockSpec((H, F), lambda i: (0, 0)),
                  pl.BlockSpec((1, F), lambda i: (0, 0)),
                  pl.BlockSpec((F, H), lambda i: (0, 0)),
                  pl.BlockSpec((1, H), lambda i: (0, 0)),
                  pl.BlockSpec((1, H), lambda i: (0, 0)),
                  pl.BlockSpec((1, H), lambda i: (0, 0))],
        out_specs=row_spec,
        compiler_params=pltpu.CompilerParams(
            dimension_semantics=("parallel",),
            vmem_limit_bytes=VMEM_LIMIT),
    )(x, w1, b1.reshape(1, F), w2, b2.reshape(1, H),
      g.reshape(1, H), be.reshape(1, H))


# ---------------- fused embedding add (word+pos+type) + LayerNorm ------------

def _emb_add_ln_kernel(we_ref, te_ref, pe_ref, g_ref, b_ref, o_ref, *, eps):
    x = we_ref[0] + te_ref[0] + pe_ref[...]                    # (S, H) f32
    mu = jnp.mean(x, axis=-1, keepdims=True)
    var = jnp.mean((x - mu) ** 2, axis=-1, keepdims=True)
    o_ref[0] = ((x - mu) * jax.lax.rsqrt(var + eps) * g_ref[...]
                + b_ref[...]).astype(o_ref.dtype)


def emb_add_ln(we, te, pe, g, b, eps=1e-12):
    B, S, H = we.shape
    slab = pl.BlockSpec((1, S, H), lambda i: (i, 0, 0))
    return pl.pallas_call(
        functools.partial(_emb_add_ln_kernel, eps=eps),
        out_shape=jax.ShapeDtypeStruct((B, S, H), jnp.bfloat16),
        grid=(B,),
        in_specs=[slab, slab,
                  pl.BlockSpec((S, H), lambda i: (0, 0)),
                  pl.BlockSpec((1, H), lambda i: (0, 0)),
                  pl.BlockSpec((1, H), lambda i: (0, 0))],
        out_specs=slab,
        compiler_params=pltpu.CompilerParams(
            dimension_semantics=("parallel",),
            vmem_limit_bytes=VMEM_LIMIT),
    )(we, te, pe, g.reshape(1, H), b.reshape(1, H))


# --------------------- fused pooler (tanh) + classifier ----------------------

def _pool_cls_kernel(cls_ref, wp_ref, bp_ref, wo_ref, bo_ref, o_ref):
    pooled = jnp.tanh(jnp.dot(cls_ref[...], wp_ref[...],
                              preferred_element_type=jnp.float32) + bp_ref[...])
    # bert_drop: Dropout(0.3) is identity at inference (eval mode)
    o_ref[...] = jnp.dot(pooled.astype(jnp.bfloat16), wo_ref[...],
                         preferred_element_type=jnp.float32) + bo_ref[...]


def pool_classify(cls, wp, bp, wo_pad, bo_pad):
    B, H = cls.shape
    Cp = wo_pad.shape[1]     # classifier dim padded to a lane-dense multiple of 128
    return pl.pallas_call(
        _pool_cls_kernel,
        out_shape=jax.ShapeDtypeStruct((B, Cp), jnp.float32),
    )(cls, wp, bp.reshape(1, H), wo_pad, bo_pad.reshape(1, Cp))


# --------------------------- parameters / model ------------------------------

CFG = dict(vocab=50, type_vocab=2, max_pos=16, hidden=32, heads=4,
           ffn=128, layers=2, num_classes=5)


def init_params(key, cfg):
    std = 0.02
    H, F = cfg["hidden"], cfg["ffn"]
    C = cfg["num_classes"]
    Cp = ((C + 127) // 128) * 128   # pad classifier output to 128 lanes

    def w(k, d_in, d_out):          # dense weights stored in bf16 (MXU operands)
        return (std * jax.random.normal(k, (d_in, d_out), jnp.float32)
                ).astype(jnp.bfloat16)

    keys = iter(jax.random.split(key, 8 + 8 * cfg["layers"]))
    out_w = w(next(keys), H, C)
    p = dict(
        word_emb=std * jax.random.normal(next(keys), (cfg["vocab"], H), jnp.float32),
        pos_emb=std * jax.random.normal(next(keys), (cfg["max_pos"], H), jnp.float32),
        type_emb=std * jax.random.normal(next(keys), (cfg["type_vocab"], H), jnp.float32),
        emb_ln_g=jnp.ones((H,), jnp.float32),
        emb_ln_b=jnp.zeros((H,), jnp.float32),
        layers=[],
        pooler_w=w(next(keys), H, H),
        pooler_b=jnp.zeros((H,), jnp.float32),
        out_w_pad=jnp.zeros((H, Cp), jnp.bfloat16).at[:, :C].set(out_w),
        out_b_pad=jnp.zeros((Cp,), jnp.float32),
    )
    for _ in range(cfg["layers"]):
        p["layers"].append(dict(
            qkv_w=w(next(keys), H, 3 * H),               # fused [Wq | Wk | Wv]
            qkv_b=jnp.zeros((3 * H,), jnp.float32),
            attn_out_w=w(next(keys), H, H),
            attn_out_b=jnp.zeros((H,), jnp.float32),
            ln1_g=jnp.ones((H,), jnp.float32), ln1_b=jnp.zeros((H,), jnp.float32),
            ffn1_w=w(next(keys), H, F), ffn1_b=jnp.zeros((F,), jnp.float32),
            ffn2_w=w(next(keys), F, H), ffn2_b=jnp.zeros((H,), jnp.float32),
            ln2_g=jnp.ones((H,), jnp.float32), ln2_b=jnp.zeros((H,), jnp.float32),
        ))
    return p


def bert_base_uncased_forward(params, ids, mask, token_type_ids, cfg=CFG):
    B, S = ids.shape
    H, nH = cfg["hidden"], cfg["heads"]
    dh = H // nH
    scale = 1.0 / float(dh) ** 0.5
    M = B * S

    # ---- embeddings: gathers are XLA glue; add + LayerNorm fused in Pallas ----
    we = jnp.take(params["word_emb"], ids, axis=0)               # (B,S,H) f32
    te = jnp.take(params["type_emb"], token_type_ids, axis=0)    # (B,S,H) f32
    pe = params["pos_emb"][:S, :]                                # (S,H)   f32
    x = emb_add_ln(we, te, pe, params["emb_ln_g"], params["emb_ln_b"])  # (B,S,H) bf16
    x = x.reshape(M, H)

    # additive attention-mask bias computed ONCE per forward, reused by all layers
    attn_bias = ((1.0 - mask.astype(jnp.float32)) * -1e9).reshape(B, 1, S)

    # ---- transformer encoder layers (4 Pallas calls per layer, bf16 slabs) ----
    for lp in params["layers"]:
        qkv = fused_linear(x, lp["qkv_w"], lp["qkv_b"])          # (M, 3H) bf16
        ctx = attention(qkv.reshape(B, S, 3 * H), attn_bias, nH, dh, scale)
        x = proj_add_ln(ctx.reshape(M, H), x,
                        lp["attn_out_w"], lp["attn_out_b"],
                        lp["ln1_g"], lp["ln1_b"])
        x = ffn_add_ln(x, lp["ffn1_w"], lp["ffn1_b"],
                       lp["ffn2_w"], lp["ffn2_b"],
                       lp["ln2_g"], lp["ln2_b"])

    # ---- pooler (tanh(dense(CLS))) + dropout(eval=id) + classifier, fused ----
    cls = x.reshape(B, S, H)[:, 0, :]                            # (B, H) bf16
    logits_pad = pool_classify(cls, params["pooler_w"], params["pooler_b"],
                               params["out_w_pad"], params["out_b_pad"])
    return logits_pad[:, :cfg["num_classes"]]                    # (B, 5) f32


# ----------------------------------- main ------------------------------------

if __name__ == "__main__":
    key = jax.random.PRNGKey(0)
    k_param, k_ids, k_type = jax.random.split(key, 3)

    B, S = 2, 8
    params = init_params(k_param, CFG)

    ids = jax.random.randint(k_ids, (B, S), 0, CFG["vocab"], dtype=jnp.int32)
    mask = jnp.array([[1, 1, 1, 1, 1, 1, 1, 1],
                      [1, 1, 1, 1, 1, 0, 0, 0]], dtype=jnp.int32)
    token_type_ids = jax.random.randint(k_type, (B, S), 0, CFG["type_vocab"],
                                        dtype=jnp.int32)

    fwd = jax.jit(functools.partial(bert_base_uncased_forward, cfg=CFG))
    logits = fwd(params, ids, mask, token_type_ids)
    logits = jax.block_until_ready(logits)
    assert logits.shape == (B, CFG["num_classes"]) and logits.dtype == jnp.float32
    print("KERNEL_OK")
</pallas_src>

<mosaic_0001>
module attributes {stable_mosaic.version = 11 : i64} {
  func.func @_emb_add_ln_kernel(%arg0: i32, %arg1: memref<1x8x32xf32, #tpu.memory_space<vmem>>, %arg2: memref<1x8x32xf32, #tpu.memory_space<vmem>>, %arg3: memref<8x32xf32, #tpu.memory_space<vmem>>, %arg4: memref<1x32xf32, #tpu.memory_space<vmem>>, %arg5: memref<1x32xf32, #tpu.memory_space<vmem>>, %arg6: memref<1x8x32xbf16, #tpu.memory_space<vmem>>) attributes {dimension_semantics = [#tpu.dimension_semantics<parallel>], iteration_bounds = array<i64: 2>, scalar_prefetch = 0 : i64, scratch_operands = 0 : i64, tpu.core_type = #tpu.core_type<tc>, window_params = [{transform_indices = @transform_0, window_bounds = array<i64: 1, 8, 32>}, {transform_indices = @transform_1, window_bounds = array<i64: 1, 8, 32>}, {pipeline_mode = #tpu.pipeline_mode<synchronous>, transform_indices = @transform_2, window_bounds = array<i64: 8, 32>}, {pipeline_mode = #tpu.pipeline_mode<synchronous>, transform_indices = @transform_3, window_bounds = array<i64: 1, 32>}, {pipeline_mode = #tpu.pipeline_mode<synchronous>, transform_indices = @transform_4, window_bounds = array<i64: 1, 32>}, {transform_indices = @transform_5, window_bounds = array<i64: 1, 8, 32>}]} {
    %c0 = arith.constant 0 : index
    %c0_0 = arith.constant 0 : index
    %c0_1 = arith.constant 0 : index
    %0 = vector.load %arg1[%c0, %c0_0, %c0_1] : memref<1x8x32xf32, #tpu.memory_space<vmem>>, vector<1x8x32xf32>
    %1 = vector.shape_cast %0 : vector<1x8x32xf32> to vector<8x32xf32>
    %c0_2 = arith.constant 0 : index
    %c0_3 = arith.constant 0 : index
    %c0_4 = arith.constant 0 : index
    %2 = vector.load %arg2[%c0_2, %c0_3, %c0_4] : memref<1x8x32xf32, #tpu.memory_space<vmem>>, vector<1x8x32xf32>
    %3 = vector.shape_cast %2 : vector<1x8x32xf32> to vector<8x32xf32>
    %4 = arith.addf %1, %3 : vector<8x32xf32>
    %c0_5 = arith.constant 0 : index
    %c0_6 = arith.constant 0 : index
    %5 = vector.load %arg3[%c0_5, %c0_6] : memref<8x32xf32, #tpu.memory_space<vmem>>, vector<8x32xf32>
    %6 = arith.addf %4, %5 : vector<8x32xf32>
    %cst = arith.constant dense<0.000000e+00> : vector<8xf32>
    %7 = vector.multi_reduction <add>, %6, %cst [1] : vector<8x32xf32> to vector<8xf32>
    %8 = vector.shape_cast %7 : vector<8xf32> to vector<8x1xf32>
    %cst_7 = arith.constant 3.200000e+01 : f32
    %9 = vector.broadcast %cst_7 : f32 to vector<8x1xf32>
    %10 = arith.divf %8, %9 : vector<8x1xf32>
    %11 = vector.broadcast %10 : vector<8x1xf32> to vector<8x32xf32>
    %12 = arith.subf %6, %11 : vector<8x32xf32>
    %13 = arith.mulf %12, %12 : vector<8x32xf32>
    %cst_8 = arith.constant dense<0.000000e+00> : vector<8xf32>
    %14 = vector.multi_reduction <add>, %13, %cst_8 [1] : vector<8x32xf32> to vector<8xf32>
    %15 = vector.shape_cast %14 : vector<8xf32> to vector<8x1xf32>
    %cst_9 = arith.constant 3.200000e+01 : f32
    %16 = vector.broadcast %cst_9 : f32 to vector<8x1xf32>
    %17 = arith.divf %15, %16 : vector<8x1xf32>
    %18 = vector.broadcast %10 : vector<8x1xf32> to vector<8x32xf32>
    %19 = arith.subf %6, %18 : vector<8x32xf32>
    %cst_10 = arith.constant 9.99999996E-13 : f32
    %20 = vector.broadcast %cst_10 : f32 to vector<8x1xf32>
    %21 = arith.addf %17, %20 : vector<8x1xf32>
    %22 = math.rsqrt %21 : vector<8x1xf32>
    %23 = vector.broadcast %22 : vector<8x1xf32> to vector<8x32xf32>
    %24 = arith.mulf %19, %23 : vector<8x32xf32>
    %c0_11 = arith.constant 0 : index
    %c0_12 = arith.constant 0 : index
    %25 = vector.load %arg4[%c0_11, %c0_12] : memref<1x32xf32, #tpu.memory_space<vmem>>, vector<1x32xf32>
    %26 = vector.broadcast %25 : vector<1x32xf32> to vector<8x32xf32>
    %27 = arith.mulf %24, %26 : vector<8x32xf32>
    %c0_13 = arith.constant 0 : index
    %c0_14 = arith.constant 0 : index
    %28 = vector.load %arg5[%c0_13, %c0_14] : memref<1x32xf32, #tpu.memory_space<vmem>>, vector<1x32xf32>
    %29 = vector.broadcast %28 : vector<1x32xf32> to vector<8x32xf32>
    %30 = arith.addf %27, %29 : vector<8x32xf32>
    %31 = arith.truncf %30 : vector<8x32xf32> to vector<8x32xbf16>
    %c0_15 = arith.constant 0 : index
    %c0_16 = arith.constant 0 : index
    %c0_17 = arith.constant 0 : index
    %32 = vector.load %arg6[%c0_15, %c0_16, %c0_17] : memref<1x8x32xbf16, #tpu.memory_space<vmem>>, vector<1x8x32xbf16>
    %33 = vector.shape_cast %32 : vector<1x8x32xbf16> to vector<8x32xbf16>
    %34 = vector.shape_cast %31 : vector<8x32xbf16> to vector<1x8x32xbf16>
    tpu.vector_store %arg6[%c0_15, %c0_16, %c0_17], %34 {strides = array<i32>} : memref<1x8x32xbf16, #tpu.memory_space<vmem>>, vector<1x8x32xbf16>,
    return
  }
  func.func @transform_0(%arg0: i32) -> (i32, i32, i32) {
    %c0_i32 = arith.constant 0 : i32
    %c0_i32_0 = arith.constant 0 : i32
    %c0_i32_1 = arith.constant 0 : i32
    return %arg0, %c0_i32, %c0_i32_0 : i32, i32, i32
  }
  func.func @transform_1(%arg0: i32) -> (i32, i32, i32) {
    %c0_i32 = arith.constant 0 : i32
    %c0_i32_0 = arith.constant 0 : i32
    %c0_i32_1 = arith.constant 0 : i32
    return %arg0, %c0_i32, %c0_i32_0 : i32, i32, i32
  }
  func.func @transform_2(%arg0: i32) -> (i32, i32) {
    %c0_i32 = arith.constant 0 : i32
    %c0_i32_0 = arith.constant 0 : i32
    %c0_i32_1 = arith.constant 0 : i32
    return %c0_i32, %c0_i32_0 : i32, i32
  }
  func.func @transform_3(%arg0: i32) -> (i32, i32) {
    %c0_i32 = arith.constant 0 : i32
    %c0_i32_0 = arith.constant 0 : i32
    %c0_i32_1 = arith.constant 0 : i32
    return %c0_i32, %c0_i32_0 : i32, i32
  }
  func.func @transform_4(%arg0: i32) -> (i32, i32) {
    %c0_i32 = arith.constant 0 : i32
    %c0_i32_0 = arith.constant 0 : i32
    %c0_i32_1 = arith.constant 0 : i32
    return %c0_i32, %c0_i32_0 : i32, i32
  }
  func.func @transform_5(%arg0: i32) -> (i32, i32, i32) {
    %c0_i32 = arith.constant 0 : i32
    %c0_i32_0 = arith.constant 0 : i32
    %c0_i32_1 = arith.constant 0 : i32
    return %arg0, %c0_i32, %c0_i32_0 : i32, i32, i32
  }
}

module attributes {stable_mosaic.version = 11 : i64} {
  func.func @_attention_kernel(%arg0: i32, %arg1: memref<1x8x96xbf16, #tpu.memory_space<vmem>>, %arg2: memref<1x1x8xf32, #tpu.memory_space<vmem>>, %arg3: memref<1x8x32xbf16, #tpu.memory_space<vmem>>) attributes {dimension_semantics = [#tpu.dimension_semantics<parallel>], iteration_bounds = array<i64: 2>, scalar_prefetch = 0 : i64, scratch_operands = 0 : i64, tpu.core_type = #tpu.core_type<tc>, window_params = [{transform_indices = @transform_0, window_bounds = array<i64: 1, 8, 96>}, {transform_indices = @transform_1, window_bounds = array<i64: 1, 1, 8>}, {transform_indices = @transform_2, window_bounds = array<i64: 1, 8, 32>}]} {
    %c0 = arith.constant 0 : index
    %c0_0 = arith.constant 0 : index
    %c0_1 = arith.constant 0 : index
    %0 = vector.load %arg1[%c0, %c0_0, %c0_1] : memref<1x8x96xbf16, #tpu.memory_space<vmem>>, vector<1x8x96xbf16>
    %1 = vector.shape_cast %0 : vector<1x8x96xbf16> to vector<8x96xbf16>
    %2 = vector.extract_strided_slice %1 {offsets = [0, 0], sizes = [8, 8], strides = [1, 1]} : vector<8x96xbf16> to vector<8x8xbf16>
    %3 = vector.extract_strided_slice %1 {offsets = [0, 8], sizes = [8, 8], strides = [1, 1]} : vector<8x96xbf16> to vector<8x8xbf16>
    %4 = vector.extract_strided_slice %1 {offsets = [0, 16], sizes = [8, 8], strides = [1, 1]} : vector<8x96xbf16> to vector<8x8xbf16>
    %5 = vector.extract_strided_slice %1 {offsets = [0, 24], sizes = [8, 8], strides = [1, 1]} : vector<8x96xbf16> to vector<8x8xbf16>
    %6 = vector.shape_cast %2 : vector<8x8xbf16> to vector<1x8x8xbf16>
    %7 = vector.shape_cast %3 : vector<8x8xbf16> to vector<1x8x8xbf16>
    %8 = vector.shape_cast %4 : vector<8x8xbf16> to vector<1x8x8xbf16>
    %9 = vector.shape_cast %5 : vector<8x8xbf16> to vector<1x8x8xbf16>
    %10 = tpu.concatenate %6, %7, %8, %9 in 0 : vector<1x8x8xbf16>, vector<1x8x8xbf16>, vector<1x8x8xbf16>, vector<1x8x8xbf16> -> vector<4x8x8xbf16>
    %11 = vector.extract_strided_slice %1 {offsets = [0, 32], sizes = [8, 8], strides = [1, 1]} : vector<8x96xbf16> to vector<8x8xbf16>
    %12 = vector.extract_strided_slice %1 {offsets = [0, 40], sizes = [8, 8], strides = [1, 1]} : vector<8x96xbf16> to vector<8x8xbf16>
    %13 = vector.extract_strided_slice %1 {offsets = [0, 48], sizes = [8, 8], strides = [1, 1]} : vector<8x96xbf16> to vector<8x8xbf16>
    %14 = vector.extract_strided_slice %1 {offsets = [0, 56], sizes = [8, 8], strides = [1, 1]} : vector<8x96xbf16> to vector<8x8xbf16>
    %15 = vector.shape_cast %11 : vector<8x8xbf16> to vector<1x8x8xbf16>
    %16 = vector.shape_cast %12 : vector<8x8xbf16> to vector<1x8x8xbf16>
    %17 = vector.shape_cast %13 : vector<8x8xbf16> to vector<1x8x8xbf16>
    %18 = vector.shape_cast %14 : vector<8x8xbf16> to vector<1x8x8xbf16>
    %19 = tpu.concatenate %15, %16, %17, %18 in 0 : vector<1x8x8xbf16>, vector<1x8x8xbf16>, vector<1x8x8xbf16>, vector<1x8x8xbf16> -> vector<4x8x8xbf16>
    %20 = vector.extract_strided_slice %1 {offsets = [0, 64], sizes = [8, 8], strides = [1, 1]} : vector<8x96xbf16> to vector<8x8xbf16>
    %21 = vector.extract_strided_slice %1 {offsets = [0, 72], sizes = [8, 8], strides = [1, 1]} : vector<8x96xbf16> to vector<8x8xbf16>
    %22 = vector.extract_strided_slice %1 {offsets = [0, 80], sizes = [8, 8], strides = [1, 1]} : vector<8x96xbf16> to vector<8x8xbf16>
    %23 = vector.extract_strided_slice %1 {offsets = [0, 88], sizes = [8, 8], strides = [1, 1]} : vector<8x96xbf16> to vector<8x8xbf16>
    %24 = vector.shape_cast %20 : vector<8x8xbf16> to vector<1x8x8xbf16>
    %25 = vector.shape_cast %21 : vector<8x8xbf16> to vector<1x8x8xbf16>
    %26 = vector.shape_cast %22 : vector<8x8xbf16> to vector<1x8x8xbf16>
    %27 = vector.shape_cast %23 : vector<8x8xbf16> to vector<1x8x8xbf16>
    %28 = tpu.concatenate %24, %25, %26, %27 in 0 : vector<1x8x8xbf16>, vector<1x8x8xbf16>, vector<1x8x8xbf16>, vector<1x8x8xbf16> -> vector<4x8x8xbf16>
    %cst = arith.constant 3.535160e-01 : bf16
    %29 = vector.broadcast %cst : bf16 to vector<4x8x8xbf16>
    %30 = arith.mulf %10, %29 : vector<4x8x8xbf16>
    "tpu.trace_start"() <{level = 10 : i32, message = "hqd,hkd->hqk"}> : () -> ()
    %cst_2 = arith.constant dense<0.000000e+00> : vector<4x8x8xf32>
    %31 = tpu.matmul %30, %19, %cst_2 {dimension_numbers = #tpu.dot_dimension_numbers<[2], [2], [1], [1], [0, 0, 0, 1, 1, 1], [0], [0]>} : vector<4x8x8xbf16>, vector<4x8x8xbf16>, vector<4x8x8xf32> -> vector<4x8x8xf32>
    "tpu.trace_stop"() : () -> ()
    %c0_3 = arith.constant 0 : index
    %c0_4 = arith.constant 0 : index
    %c0_5 = arith.constant 0 : index
    %32 = vector.load %arg2[%c0_3, %c0_4, %c0_5] : memref<1x1x8xf32, #tpu.memory_space<vmem>>, vector<1x1x8xf32>
    %33 = vector.shape_cast %32 : vector<1x1x8xf32> to vector<1x8xf32>
    %34 = vector.shape_cast %33 : vector<1x8xf32> to vector<1x1x8xf32>
    %35 = vector.broadcast %34 : vector<1x1x8xf32> to vector<4x8x8xf32>
    %36 = arith.addf %31, %35 : vector<4x8x8xf32>
    %cst_6 = arith.constant dense<0xFF800000> : vector<4x8xf32>
    %37 = vector.multi_reduction <maximumf>, %36, %cst_6 [2] : vector<4x8x8xf32> to vector<4x8xf32>
    %38 = vector.shape_cast %37 : vector<4x8xf32> to vector<4x8x1xf32>
    %39 = vector.broadcast %38 : vector<4x8x1xf32> to vector<4x8x8xf32>
    %40 = arith.subf %36, %39 : vector<4x8x8xf32>
    %41 = math.exp %40 : vector<4x8x8xf32>
    %cst_7 = arith.constant dense<0.000000e+00> : vector<4x8xf32>
    %42 = vector.multi_reduction <add>, %41, %cst_7 [2] : vector<4x8x8xf32> to vector<4x8xf32>
    %43 = vector.shape_cast %42 : vector<4x8xf32> to vector<4x8x1xf32>
    %44 = tpu.reciprocal %43 {approx = true} : vector<4x8x1xf32> -> vector<4x8x1xf32>
    %45 = arith.truncf %41 : vector<4x8x8xf32> to vector<4x8x8xbf16>
    "tpu.trace_start"() <{level = 10 : i32, message = "hqk,hkd->hqd"}> : () -> ()
    %cst_8 = arith.constant dense<0.000000e+00> : vector<4x8x8xf32>
    %46 = tpu.matmul %45, %28, %cst_8 {dimension_numbers = #tpu.dot_dimension_numbers<[2], [1], [1], [2], [0, 0, 0, 1, 1, 2], [0], [0]>} : vector<4x8x8xbf16>, vector<4x8x8xbf16>, vector<4x8x8xf32> -> vector<4x8x8xf32>
    "tpu.trace_stop"() : () -> ()
    %47 = vector.broadcast %44 : vector<4x8x1xf32> to vector<4x8x8xf32>
    %48 = arith.mulf %46, %47 : vector<4x8x8xf32>
    %49 = vector.extract_strided_slice %48 {offsets = [0, 0, 0], sizes = [1, 8, 8], strides = [1, 1, 1]} : vector<4x8x8xf32> to vector<1x8x8xf32>
    %50 = vector.shape_cast %49 : vector<1x8x8xf32> to vector<8x8xf32>
    %51 = vector.extract_strided_slice %48 {offsets = [1, 0, 0], sizes = [1, 8, 8], strides = [1, 1, 1]} : vector<4x8x8xf32> to vector<1x8x8xf32>
    %52 = vector.shape_cast %51 : vector<1x8x8xf32> to vector<8x8xf32>
    %53 = vector.extract_strided_slice %48 {offsets = [2, 0, 0], sizes = [1, 8, 8], strides = [1, 1, 1]} : vector<4x8x8xf32> to vector<1x8x8xf32>
    %54 = vector.shape_cast %53 : vector<1x8x8xf32> to vector<8x8xf32>
    %55 = vector.extract_strided_slice %48 {offsets = [3, 0, 0], sizes = [1, 8, 8], strides = [1, 1, 1]} : vector<4x8x8xf32> to vector<1x8x8xf32>
    %56 = vector.shape_cast %55 : vector<1x8x8xf32> to vector<8x8xf32>
    %57 = tpu.concatenate %50, %52, %54, %56 in 1 : vector<8x8xf32>, vector<8x8xf32>, vector<8x8xf32>, vector<8x8xf32> -> vector<8x32xf32>
    %58 = arith.truncf %57 : vector<8x32xf32> to vector<8x32xbf16>
    %c0_9 = arith.constant 0 : index
    %c0_10 = arith.constant 0 : index
    %c0_11 = arith.constant 0 : index
    %59 = vector.load %arg3[%c0_9, %c0_10, %c0_11] : memref<1x8x32xbf16, #tpu.memory_space<vmem>>, vector<1x8x32xbf16>
    %60 = vector.shape_cast %59 : vector<1x8x32xbf16> to vector<8x32xbf16>
    %61 = vector.shape_cast %58 : vector<8x32xbf16> to vector<1x8x32xbf16>
    tpu.vector_store %arg3[%c0_9, %c0_10, %c0_11], %61 {strides = array<i32>} : memref<1x8x32xbf16, #tpu.memory_space<vmem>>, vector<1x8x32xbf16>,
    return
  }
  func.func @transform_0(%arg0: i32) -> (i32, i32, i32) {
    %c0_i32 = arith.constant 0 : i32
    %c0_i32_0 = arith.constant 0 : i32
    %c0_i32_1 = arith.constant 0 : i32
    return %arg0, %c0_i32, %c0_i32_0 : i32, i32, i32
  }
  func.func @transform_1(%arg0: i32) -> (i32, i32, i32) {
    %c0_i32 = arith.constant 0 : i32
    %c0_i32_0 = arith.constant 0 : i32
    %c0_i32_1 = arith.constant 0 : i32
    return %arg0, %c0_i32, %c0_i32_0 : i32, i32, i32
  }
  func.func @transform_2(%arg0: i32) -> (i32, i32, i32) {
    %c0_i32 = arith.constant 0 : i32
    %c0_i32_0 = arith.constant 0 : i32
    %c0_i32_1 = arith.constant 0 : i32
    return %arg0, %c0_i32, %c0_i32_0 : i32, i32, i32
  }
}

module attributes {stable_mosaic.version = 11 : i64} {
  func.func @_proj_add_ln_kernel(%arg0: i32, %arg1: memref<16x32xbf16, #tpu.memory_space<vmem>>, %arg2: memref<16x32xbf16, #tpu.memory_space<vmem>>, %arg3: memref<32x32xbf16, #tpu.memory_space<vmem>>, %arg4: memref<1x32xf32, #tpu.memory_space<vmem>>, %arg5: memref<1x32xf32, #tpu.memory_space<vmem>>, %arg6: memref<1x32xf32, #tpu.memory_space<vmem>>, %arg7: memref<16x32xbf16, #tpu.memory_space<vmem>>) attributes {dimension_semantics = [#tpu.dimension_semantics<parallel>], iteration_bounds = array<i64: 1>, scalar_prefetch = 0 : i64, scratch_operands = 0 : i64, tpu.core_type = #tpu.core_type<tc>, window_params = [{transform_indices = @transform_0, window_bounds = array<i64: 16, 32>}, {transform_indices = @transform_1, window_bounds = array<i64: 16, 32>}, {pipeline_mode = #tpu.pipeline_mode<synchronous>, transform_indices = @transform_2, window_bounds = array<i64: 32, 32>}, {pipeline_mode = #tpu.pipeline_mode<synchronous>, transform_indices = @transform_3, window_bounds = array<i64: 1, 32>}, {pipeline_mode = #tpu.pipeline_mode<synchronous>, transform_indices = @transform_4, window_bounds = array<i64: 1, 32>}, {pipeline_mode = #tpu.pipeline_mode<synchronous>, transform_indices = @transform_5, window_bounds = array<i64: 1, 32>}, {transform_indices = @transform_6, window_bounds = array<i64: 16, 32>}]} {
    %c0 = arith.constant 0 : index
    %c0_0 = arith.constant 0 : index
    %0 = vector.load %arg1[%c0, %c0_0] : memref<16x32xbf16, #tpu.memory_space<vmem>>, vector<16x32xbf16>
    %c0_1 = arith.constant 0 : index
    %c0_2 = arith.constant 0 : index
    %1 = vector.load %arg3[%c0_1, %c0_2] : memref<32x32xbf16, #tpu.memory_space<vmem>>, vector<32x32xbf16>
    %cst = arith.constant dense<0.000000e+00> : vector<16x32xf32>
    %2 = tpu.matmul %0, %1, %cst {dimension_numbers = #tpu.dot_dimension_numbers<[1], [0], [0], [1], [0, 0, 1, 1], [], []>} : vector<16x32xbf16>, vector<32x32xbf16>, vector<16x32xf32> -> vector<16x32xf32>
    %c0_3 = arith.constant 0 : index
    %c0_4 = arith.constant 0 : index
    %3 = vector.load %arg4[%c0_3, %c0_4] : memref<1x32xf32, #tpu.memory_space<vmem>>, vector<1x32xf32>
    %4 = vector.broadcast %3 : vector<1x32xf32> to vector<16x32xf32>
    %5 = arith.addf %2, %4 : vector<16x32xf32>
    %c0_5 = arith.constant 0 : index
    %c0_6 = arith.constant 0 : index
    %6 = vector.load %arg2[%c0_5, %c0_6] : memref<16x32xbf16, #tpu.memory_space<vmem>>, vector<16x32xbf16>
    %7 = arith.extf %6 : vector<16x32xbf16> to vector<16x32xf32>
    %8 = arith.addf %5, %7 : vector<16x32xf32>
    %cst_7 = arith.constant dense<0.000000e+00> : vector<16xf32>
    %9 = vector.multi_reduction <add>, %8, %cst_7 [1] : vector<16x32xf32> to vector<16xf32>
    %10 = vector.shape_cast %9 : vector<16xf32> to vector<16x1xf32>
    %cst_8 = arith.constant 3.200000e+01 : f32
    %11 = vector.broadcast %cst_8 : f32 to vector<16x1xf32>
    %12 = arith.divf %10, %11 : vector<16x1xf32>
    %13 = vector.broadcast %12 : vector<16x1xf32> to vector<16x32xf32>
    %14 = arith.subf %8, %13 : vector<16x32xf32>
    %15 = arith.mulf %14, %14 : vector<16x32xf32>
    %cst_9 = arith.constant dense<0.000000e+00> : vector<16xf32>
    %16 = vector.multi_reduction <add>, %15, %cst_9 [1] : vector<16x32xf32> to vector<16xf32>
    %17 = vector.shape_cast %16 : vector<16xf32> to vector<16x1xf32>
    %cst_10 = arith.constant 3.200000e+01 : f32
    %18 = vector.broadcast %cst_10 : f32 to vector<16x1xf32>
    %19 = arith.divf %17, %18 : vector<16x1xf32>
    %20 = vector.broadcast %12 : vector<16x1xf32> to vector<16x32xf32>
    %21 = arith.subf %8, %20 : vector<16x32xf32>
    %cst_11 = arith.constant 9.99999996E-13 : f32
    %22 = vector.broadcast %cst_11 : f32 to vector<16x1xf32>
    %23 = arith.addf %19, %22 : vector<16x1xf32>
    %24 = math.rsqrt %23 : vector<16x1xf32>
    %25 = vector.broadcast %24 : vector<16x1xf32> to vector<16x32xf32>
    %26 = arith.mulf %21, %25 : vector<16x32xf32>
    %c0_12 = arith.constant 0 : index
    %c0_13 = arith.constant 0 : index
    %27 = vector.load %arg5[%c0_12, %c0_13] : memref<1x32xf32, #tpu.memory_space<vmem>>, vector<1x32xf32>
    %28 = vector.broadcast %27 : vector<1x32xf32> to vector<16x32xf32>
    %29 = arith.mulf %26, %28 : vector<16x32xf32>
    %c0_14 = arith.constant 0 : index
    %c0_15 = arith.constant 0 : index
    %30 = vector.load %arg6[%c0_14, %c0_15] : memref<1x32xf32, #tpu.memory_space<vmem>>, vector<1x32xf32>
    %31 = vector.broadcast %30 : vector<1x32xf32> to vector<16x32xf32>
    %32 = arith.addf %29, %31 : vector<16x32xf32>
    %33 = arith.truncf %32 : vector<16x32xf32> to vector<16x32xbf16>
    %c0_16 = arith.constant 0 : index
    %c0_17 = arith.constant 0 : index
    %34 = vector.load %arg7[%c0_16, %c0_17] : memref<16x32xbf16, #tpu.memory_space<vmem>>, vector<16x32xbf16>
    tpu.vector_store %arg7[%c0_16, %c0_17], %33 {strides = array<i32>} : memref<16x32xbf16, #tpu.memory_space<vmem>>, vector<16x32xbf16>,
    return
  }
  func.func @transform_0(%arg0: i32) -> (i32, i32) {
    %c0_i32 = arith.constant 0 : i32
    %c0_i32_0 = arith.constant 0 : i32
    return %arg0, %c0_i32 : i32, i32
  }
  func.func @transform_1(%arg0: i32) -> (i32, i32) {
    %c0_i32 = arith.constant 0 : i32
    %c0_i32_0 = arith.constant 0 : i32
    return %arg0, %c0_i32 : i32, i32
  }
  func.func @transform_2(%arg0: i32) -> (i32, i32) {
    %c0_i32 = arith.constant 0 : i32
    %c0_i32_0 = arith.constant 0 : i32
    %c0_i32_1 = arith.constant 0 : i32
    return %c0_i32, %c0_i32_0 : i32, i32
  }
  func.func @transform_3(%arg0: i32) -> (i32, i32) {
    %c0_i32 = arith.constant 0 : i32
    %c0_i32_0 = arith.constant 0 : i32
    %c0_i32_1 = arith.constant 0 : i32
    return %c0_i32, %c0_i32_0 : i32, i32
  }
  func.func @transform_4(%arg0: i32) -> (i32, i32) {
    %c0_i32 = arith.constant 0 : i32
    %c0_i32_0 = arith.constant 0 : i32
    %c0_i32_1 = arith.constant 0 : i32
    return %c0_i32, %c0_i32_0 : i32, i32
  }
  func.func @transform_5(%arg0: i32) -> (i32, i32) {
    %c0_i32 = arith.constant 0 : i32
    %c0_i32_0 = arith.constant 0 : i32
    %c0_i32_1 = arith.constant 0 : i32
    return %c0_i32, %c0_i32_0 : i32, i32
  }
  func.func @transform_6(%arg0: i32) -> (i32, i32) {
    %c0_i32 = arith.constant 0 : i32
    %c0_i32_0 = arith.constant 0 : i32
    return %arg0, %c0_i32 : i32, i32
  }
}

module attributes {stable_mosaic.version = 11 : i64} {
  func.func @_matmul_bias_kernel(%arg0: i32, %arg1: i32, %arg2: i32, %arg3: memref<16x32xbf16, #tpu.memory_space<vmem>>, %arg4: memref<32x96xbf16, #tpu.memory_space<vmem>>, %arg5: memref<1x96xf32, #tpu.memory_space<vmem>>, %arg6: memref<16x96xbf16, #tpu.memory_space<vmem>>, %arg7: memref<16x96xf32, #tpu.memory_space<vmem>>) attributes {dimension_semantics = [#tpu.dimension_semantics<parallel>, #tpu.dimension_semantics<parallel>, #tpu.dimension_semantics<arbitrary>], iteration_bounds = array<i64: 1, 1, 1>, scalar_prefetch = 0 : i64, scratch_operands = 1 : i64, tpu.core_type = #tpu.core_type<tc>, window_params = [{transform_indices = @transform_0, window_bounds = array<i64: 16, 32>}, {transform_indices = @transform_1, window_bounds = array<i64: 32, 96>}, {transform_indices = @transform_2, window_bounds = array<i64: 1, 96>}, {transform_indices = @transform_3, window_bounds = array<i64: 16, 96>}]} {
    %c0_i32 = arith.constant 0 : i32
    %0 = arith.cmpi eq, %arg2, %c0_i32 : i32
    %1 = arith.extui %0 : i1 to i32
    %c0_i32_0 = arith.constant 0 : i32
    %2 = arith.cmpi ne, %1, %c0_i32_0 : i32
    scf.if %2 {
      %cst_10 = arith.constant 0.000000e+00 : f32
      %12 = vector.broadcast %cst_10 : f32 to vector<16x96xf32>
      %c0_11 = arith.constant 0 : index
      %c0_12 = arith.constant 0 : index
      %13 = vector.load %arg7[%c0_11, %c0_12] : memref<16x96xf32, #tpu.memory_space<vmem>>, vector<16x96xf32>
      tpu.vector_store %arg7[%c0_11, %c0_12], %12 {strides = array<i32>} : memref<16x96xf32, #tpu.memory_space<vmem>>, vector<16x96xf32>,
    } else {
    }
    %c0 = arith.constant 0 : index
    %c0_1 = arith.constant 0 : index
    %3 = vector.load %arg7[%c0, %c0_1] : memref<16x96xf32, #tpu.memory_space<vmem>>, vector<16x96xf32>
    %c0_2 = arith.constant 0 : index
    %c0_3 = arith.constant 0 : index
    %4 = vector.load %arg3[%c0_2, %c0_3] : memref<16x32xbf16, #tpu.memory_space<vmem>>, vector<16x32xbf16>
    %c0_4 = arith.constant 0 : index
    %c0_5 = arith.constant 0 : index
    %5 = vector.load %arg4[%c0_4, %c0_5] : memref<32x96xbf16, #tpu.memory_space<vmem>>, vector<32x96xbf16>
    %cst = arith.constant dense<0.000000e+00> : vector<16x96xf32>
    %6 = tpu.matmul %4, %5, %cst {dimension_numbers = #tpu.dot_dimension_numbers<[1], [0], [0], [1], [0, 0, 1, 1], [], []>} : vector<16x32xbf16>, vector<32x96xbf16>, vector<16x96xf32> -> vector<16x96xf32>
    %7 = arith.addf %3, %6 : vector<16x96xf32>
    %c0_6 = arith.constant 0 : index
    %c0_7 = arith.constant 0 : index
    %8 = vector.load %arg7[%c0_6, %c0_7] : memref<16x96xf32, #tpu.memory_space<vmem>>, vector<16x96xf32>
    tpu.vector_store %arg7[%c0_6, %c0_7], %7 {strides = array<i32>} : memref<16x96xf32, #tpu.memory_space<vmem>>, vector<16x96xf32>,
    %c0_i32_8 = arith.constant 0 : i32
    %9 = arith.cmpi eq, %arg2, %c0_i32_8 : i32
    %10 = arith.extui %9 : i1 to i32
    %c0_i32_9 = arith.constant 0 : i32
    %11 = arith.cmpi ne, %10, %c0_i32_9 : i32
    scf.if %11 {
      %c0_10 = arith.constant 0 : index
      %c0_11 = arith.constant 0 : index
      %12 = vector.load %arg7[%c0_10, %c0_11] : memref<16x96xf32, #tpu.memory_space<vmem>>, vector<16x96xf32>
      %c0_12 = arith.constant 0 : index
      %c0_13 = arith.constant 0 : index
      %13 = vector.load %arg5[%c0_12, %c0_13] : memref<1x96xf32, #tpu.memory_space<vmem>>, vector<1x96xf32>
      %14 = vector.broadcast %13 : vector<1x96xf32> to vector<16x96xf32>
      %15 = arith.addf %12, %14 : vector<16x96xf32>
      %16 = arith.truncf %15 : vector<16x96xf32> to vector<16x96xbf16>
      %c0_14 = arith.constant 0 : index
      %c0_15 = arith.constant 0 : index
      %17 = vector.load %arg6[%c0_14, %c0_15] : memref<16x96xbf16, #tpu.memory_space<vmem>>, vector<16x96xbf16>
      tpu.vector_store %arg6[%c0_14, %c0_15], %16 {strides = array<i32>} : memref<16x96xbf16, #tpu.memory_space<vmem>>, vector<16x96xbf16>,
    } else {
    }
    return
  }
  func.func @transform_0(%arg0: i32, %arg1: i32, %arg2: i32) -> (i32, i32) {
    %c0_i32 = arith.constant 0 : i32
    return %arg0, %arg2 : i32, i32
  }
  func.func @transform_1(%arg0: i32, %arg1: i32, %arg2: i32) -> (i32, i32) {
    %c0_i32 = arith.constant 0 : i32
    return %arg2, %arg1 : i32, i32
  }
  func.func @transform_2(%arg0: i32, %arg1: i32, %arg2: i32) -> (i32, i32) {
    %c0_i32 = arith.constant 0 : i32
    %c0_i32_0 = arith.constant 0 : i32
    return %c0_i32, %arg1 : i32, i32
  }
  func.func @transform_3(%arg0: i32, %arg1: i32, %arg2: i32) -> (i32, i32) {
    %c0_i32 = arith.constant 0 : i32
    return %arg0, %arg1 : i32, i32
  }
}

module attributes {stable_mosaic.version = 11 : i64} {
  func.func @_ffn_add_ln_kernel(%arg0: i32, %arg1: memref<16x32xbf16, #tpu.memory_space<vmem>>, %arg2: memref<32x128xbf16, #tpu.memory_space<vmem>>, %arg3: memref<1x128xf32, #tpu.memory_space<vmem>>, %arg4: memref<128x32xbf16, #tpu.memory_space<vmem>>, %arg5: memref<1x32xf32, #tpu.memory_space<vmem>>, %arg6: memref<1x32xf32, #tpu.memory_space<vmem>>, %arg7: memref<1x32xf32, #tpu.memory_space<vmem>>, %arg8: memref<16x32xbf16, #tpu.memory_space<vmem>>) attributes {dimension_semantics = [#tpu.dimension_semantics<parallel>], iteration_bounds = array<i64: 1>, scalar_prefetch = 0 : i64, scratch_operands = 0 : i64, tpu.core_type = #tpu.core_type<tc>, window_params = [{transform_indices = @transform_0, window_bounds = array<i64: 16, 32>}, {pipeline_mode = #tpu.pipeline_mode<synchronous>, transform_indices = @transform_1, window_bounds = array<i64: 32, 128>}, {pipeline_mode = #tpu.pipeline_mode<synchronous>, transform_indices = @transform_2, window_bounds = array<i64: 1, 128>}, {pipeline_mode = #tpu.pipeline_mode<synchronous>, transform_indices = @transform_3, window_bounds = array<i64: 128, 32>}, {pipeline_mode = #tpu.pipeline_mode<synchronous>, transform_indices = @transform_4, window_bounds = array<i64: 1, 32>}, {pipeline_mode = #tpu.pipeline_mode<synchronous>, transform_indices = @transform_5, window_bounds = array<i64: 1, 32>}, {pipeline_mode = #tpu.pipeline_mode<synchronous>, transform_indices = @transform_6, window_bounds = array<i64: 1, 32>}, {transform_indices = @transform_7, window_bounds = array<i64: 16, 32>}]} {
    %c0 = arith.constant 0 : index
    %c0_0 = arith.constant 0 : index
    %0 = vector.load %arg1[%c0, %c0_0] : memref<16x32xbf16, #tpu.memory_space<vmem>>, vector<16x32xbf16>
    %c0_1 = arith.constant 0 : index
    %c0_2 = arith.constant 0 : index
    %1 = vector.load %arg2[%c0_1, %c0_2] : memref<32x128xbf16, #tpu.memory_space<vmem>>, vector<32x128xbf16>
    %cst = arith.constant dense<0.000000e+00> : vector<16x128xf32>
    %2 = tpu.matmul %0, %1, %cst {dimension_numbers = #tpu.dot_dimension_numbers<[1], [0], [0], [1], [0, 0, 1, 1], [], []>} : vector<16x32xbf16>, vector<32x128xbf16>, vector<16x128xf32> -> vector<16x128xf32>
    %c0_3 = arith.constant 0 : index
    %c0_4 = arith.constant 0 : index
    %3 = vector.load %arg3[%c0_3, %c0_4] : memref<1x128xf32, #tpu.memory_space<vmem>>, vector<1x128xf32>
    %4 = vector.broadcast %3 : vector<1x128xf32> to vector<16x128xf32>
    %5 = arith.addf %2, %4 : vector<16x128xf32>
    %cst_5 = arith.constant 5.000000e-01 : f32
    %6 = vector.broadcast %cst_5 : f32 to vector<16x128xf32>
    %7 = arith.mulf %6, %5 : vector<16x128xf32>
    %cst_6 = arith.constant 0.707106769 : f32
    %8 = vector.broadcast %cst_6 : f32 to vector<16x128xf32>
    %9 = arith.mulf %5, %8 : vector<16x128xf32>
    %10 = math.erf %9 : vector<16x128xf32>
    %cst_7 = arith.constant 1.000000e+00 : f32
    %11 = vector.broadcast %cst_7 : f32 to vector<16x128xf32>
    %12 = arith.addf %11, %10 : vector<16x128xf32>
    %13 = arith.mulf %7, %12 : vector<16x128xf32>
    %14 = arith.truncf %13 : vector<16x128xf32> to vector<16x128xbf16>
    %c0_8 = arith.constant 0 : index
    %c0_9 = arith.constant 0 : index
    %15 = vector.load %arg4[%c0_8, %c0_9] : memref<128x32xbf16, #tpu.memory_space<vmem>>, vector<128x32xbf16>
    %cst_10 = arith.constant dense<0.000000e+00> : vector<16x32xf32>
    %16 = tpu.matmul %14, %15, %cst_10 {dimension_numbers = #tpu.dot_dimension_numbers<[1], [0], [0], [1], [0, 0, 1, 1], [], []>} : vector<16x128xbf16>, vector<128x32xbf16>, vector<16x32xf32> -> vector<16x32xf32>
    %c0_11 = arith.constant 0 : index
    %c0_12 = arith.constant 0 : index
    %17 = vector.load %arg5[%c0_11, %c0_12] : memref<1x32xf32, #tpu.memory_space<vmem>>, vector<1x32xf32>
    %18 = vector.broadcast %17 : vector<1x32xf32> to vector<16x32xf32>
    %19 = arith.addf %16, %18 : vector<16x32xf32>
    %20 = arith.extf %0 : vector<16x32xbf16> to vector<16x32xf32>
    %21 = arith.addf %19, %20 : vector<16x32xf32>
    %cst_13 = arith.constant dense<0.000000e+00> : vector<16xf32>
    %22 = vector.multi_reduction <add>, %21, %cst_13 [1] : vector<16x32xf32> to vector<16xf32>
    %23 = vector.shape_cast %22 : vector<16xf32> to vector<16x1xf32>
    %cst_14 = arith.constant 3.200000e+01 : f32
    %24 = vector.broadcast %cst_14 : f32 to vector<16x1xf32>
    %25 = arith.divf %23, %24 : vector<16x1xf32>
    %26 = vector.broadcast %25 : vector<16x1xf32> to vector<16x32xf32>
    %27 = arith.subf %21, %26 : vector<16x32xf32>
    %28 = arith.mulf %27, %27 : vector<16x32xf32>
    %cst_15 = arith.constant dense<0.000000e+00> : vector<16xf32>
    %29 = vector.multi_reduction <add>, %28, %cst_15 [1] : vector<16x32xf32> to vector<16xf32>
    %30 = vector.shape_cast %29 : vector<16xf32> to vector<16x1xf32>
    %cst_16 = arith.constant 3.200000e+01 : f32
    %31 = vector.broadcast %cst_16 : f32 to vector<16x1xf32>
    %32 = arith.divf %30, %31 : vector<16x1xf32>
    %33 = vector.broadcast %25 : vector<16x1xf32> to vector<16x32xf32>
    %34 = arith.subf %21, %33 : vector<16x32xf32>
    %cst_17 = arith.constant 9.99999996E-13 : f32
    %35 = vector.broadcast %cst_17 : f32 to vector<16x1xf32>
    %36 = arith.addf %32, %35 : vector<16x1xf32>
    %37 = math.rsqrt %36 : vector<16x1xf32>
    %38 = vector.broadcast %37 : vector<16x1xf32> to vector<16x32xf32>
    %39 = arith.mulf %34, %38 : vector<16x32xf32>
    %c0_18 = arith.constant 0 : index
    %c0_19 = arith.constant 0 : index
    %40 = vector.load %arg6[%c0_18, %c0_19] : memref<1x32xf32, #tpu.memory_space<vmem>>, vector<1x32xf32>
    %41 = vector.broadcast %40 : vector<1x32xf32> to vector<16x32xf32>
    %42 = arith.mulf %39, %41 : vector<16x32xf32>
    %c0_20 = arith.constant 0 : index
    %c0_21 = arith.constant 0 : index
    %43 = vector.load %arg7[%c0_20, %c0_21] : memref<1x32xf32, #tpu.memory_space<vmem>>, vector<1x32xf32>
    %44 = vector.broadcast %43 : vector<1x32xf32> to vector<16x32xf32>
    %45 = arith.addf %42, %44 : vector<16x32xf32>
    %46 = arith.truncf %45 : vector<16x32xf32> to vector<16x32xbf16>
    %c0_22 = arith.constant 0 : index
    %c0_23 = arith.constant 0 : index
    %47 = vector.load %arg8[%c0_22, %c0_23] : memref<16x32xbf16, #tpu.memory_space<vmem>>, vector<16x32xbf16>
    tpu.vector_store %arg8[%c0_22, %c0_23], %46 {strides = array<i32>} : memref<16x32xbf16, #tpu.memory_space<vmem>>, vector<16x32xbf16>,
    return
  }
  func.func @transform_0(%arg0: i32) -> (i32, i32) {
    %c0_i32 = arith.constant 0 : i32
    %c0_i32_0 = arith.constant 0 : i32
    return %arg0, %c0_i32 : i32, i32
  }
  func.func @transform_1(%arg0: i32) -> (i32, i32) {
    %c0_i32 = arith.constant 0 : i32
    %c0_i32_0 = arith.constant 0 : i32
    %c0_i32_1 = arith.constant 0 : i32
    return %c0_i32, %c0_i32_0 : i32, i32
  }
  func.func @transform_2(%arg0: i32) -> (i32, i32) {
    %c0_i32 = arith.constant 0 : i32
    %c0_i32_0 = arith.constant 0 : i32
    %c0_i32_1 = arith.constant 0 : i32
    return %c0_i32, %c0_i32_0 : i32, i32
  }
  func.func @transform_3(%arg0: i32) -> (i32, i32) {
    %c0_i32 = arith.constant 0 : i32
    %c0_i32_0 = arith.constant 0 : i32
    %c0_i32_1 = arith.constant 0 : i32
    return %c0_i32, %c0_i32_0 : i32, i32
  }
  func.func @transform_4(%arg0: i32) -> (i32, i32) {
    %c0_i32 = arith.constant 0 : i32
    %c0_i32_0 = arith.constant 0 : i32
    %c0_i32_1 = arith.constant 0 : i32
    return %c0_i32, %c0_i32_0 : i32, i32
  }
  func.func @transform_5(%arg0: i32) -> (i32, i32) {
    %c0_i32 = arith.constant 0 : i32
    %c0_i32_0 = arith.constant 0 : i32
    %c0_i32_1 = arith.constant 0 : i32
    return %c0_i32, %c0_i32_0 : i32, i32
  }
  func.func @transform_6(%arg0: i32) -> (i32, i32) {
    %c0_i32 = arith.constant 0 : i32
    %c0_i32_0 = arith.constant 0 : i32
    %c0_i32_1 = arith.constant 0 : i32
    return %c0_i32, %c0_i32_0 : i32, i32
  }
  func.func @transform_7(%arg0: i32) -> (i32, i32) {
    %c0_i32 = arith.constant 0 : i32
    %c0_i32_0 = arith.constant 0 : i32
    return %arg0, %c0_i32 : i32, i32
  }
}

module attributes {stable_mosaic.version = 11 : i64} {
  func.func @_pool_cls_kernel(%arg0: memref<2x32xbf16, #tpu.memory_space<vmem>>, %arg1: memref<32x32xbf16, #tpu.memory_space<vmem>>, %arg2: memref<1x32xf32, #tpu.memory_space<vmem>>, %arg3: memref<32x128xbf16, #tpu.memory_space<vmem>>, %arg4: memref<1x128xf32, #tpu.memory_space<vmem>>, %arg5: memref<2x128xf32, #tpu.memory_space<vmem>>) attributes {dimension_semantics = [], scalar_prefetch = 0 : i64, scratch_operands = 0 : i64, tpu.core_type = #tpu.core_type<tc>} {
    %c0 = arith.constant 0 : index
    %c0_0 = arith.constant 0 : index
    %0 = vector.load %arg0[%c0, %c0_0] : memref<2x32xbf16, #tpu.memory_space<vmem>>, vector<2x32xbf16>
    %c0_1 = arith.constant 0 : index
    %c0_2 = arith.constant 0 : index
    %1 = vector.load %arg1[%c0_1, %c0_2] : memref<32x32xbf16, #tpu.memory_space<vmem>>, vector<32x32xbf16>
    %cst = arith.constant dense<0.000000e+00> : vector<2x32xf32>
    %2 = tpu.matmul %0, %1, %cst {dimension_numbers = #tpu.dot_dimension_numbers<[1], [0], [0], [1], [0, 0, 1, 1], [], []>} : vector<2x32xbf16>, vector<32x32xbf16>, vector<2x32xf32> -> vector<2x32xf32>
    %c0_3 = arith.constant 0 : index
    %c0_4 = arith.constant 0 : index
    %3 = vector.load %arg2[%c0_3, %c0_4] : memref<1x32xf32, #tpu.memory_space<vmem>>, vector<1x32xf32>
    %4 = vector.broadcast %3 : vector<1x32xf32> to vector<2x32xf32>
    %5 = arith.addf %2, %4 : vector<2x32xf32>
    %6 = math.tanh %5 : vector<2x32xf32>
    %7 = arith.truncf %6 : vector<2x32xf32> to vector<2x32xbf16>
    %c0_5 = arith.constant 0 : index
    %c0_6 = arith.constant 0 : index
    %8 = vector.load %arg3[%c0_5, %c0_6] : memref<32x128xbf16, #tpu.memory_space<vmem>>, vector<32x128xbf16>
    %cst_7 = arith.constant dense<0.000000e+00> : vector<2x128xf32>
    %9 = tpu.matmul %7, %8, %cst_7 {dimension_numbers = #tpu.dot_dimension_numbers<[1], [0], [0], [1], [0, 0, 1, 1], [], []>} : vector<2x32xbf16>, vector<32x128xbf16>, vector<2x128xf32> -> vector<2x128xf32>
    %c0_8 = arith.constant 0 : index
    %c0_9 = arith.constant 0 : index
    %10 = vector.load %arg4[%c0_8, %c0_9] : memref<1x128xf32, #tpu.memory_space<vmem>>, vector<1x128xf32>
    %11 = vector.broadcast %10 : vector<1x128xf32> to vector<2x128xf32>
    %12 = arith.addf %9, %11 : vector<2x128xf32>
    %c0_10 = arith.constant 0 : index
    %c0_11 = arith.constant 0 : index
    %13 = vector.load %arg5[%c0_10, %c0_11] : memref<2x128xf32, #tpu.memory_space<vmem>>, vector<2x128xf32>
    tpu.vector_store %arg5[%c0_10, %c0_11], %12 {strides = array<i32>} : memref<2x128xf32, #tpu.memory_space<vmem>>, vector<2x128xf32>,
    return
  }
}

</mosaic_0001>

<llo_original>
// kernel: bert_base_uncased_forward.11
$region0: #{bert_base_uncased_forward.11}
  #allocation0 [shape = 'u32[]', space=smem, size = 0x4, offset = 0x4, fixed_abs, tag = 'smem constant byte address 0x4 - core index']
  #allocation1 [shape = 'u32[144,128]{1,0:T(1,128)}', space=vmem, size = 0x12000, scoped, tag = 'internal scratch']
  #allocation2 [shape = 'f32[16,96]{1,0:T(8,128)}', space=vmem, size = 0x2000, scoped, tag = 'scratch operand']
  %s0 = inlined_call_operand.vmem [shape: bf16[16,32], index: 0, kind: input, shape index: {}]
  %s1 = inlined_call_operand.vmem [shape: bf16[32,96], index: 1, kind: input, shape index: {}]
  %s2 = inlined_call_operand.vmem [shape: f32[1,96], index: 2, kind: input, shape index: {}]
  %s3 = inlined_call_operand.vmem [shape: bf16[16,96], index: 3, kind: output, shape index: {}]
  %s4 = sld [smem:[#allocation0]]
  $region30: #{bert_base_uncased_forward.11} parent=0
    _
  %s6 = ssub.s32 1, %s4
  %s7 = scalar_select 0, %s6, %s4
  // Predicated region
  $region2: #{bert_base_uncased_forward.11} parent=0 // pred_check
    _
  $region3: #{bert_base_uncased_forward.11} parent=0 // pred_check_branch
    %9 = sbr.rel (0) target = $region5
  $region4: #{bert_base_uncased_forward.11} parent=0 // pred_region
    _
  $region5: #{bert_base_uncased_forward.11} parent=0 // pred_fallthru
    _
  // Predicated region
  $region6: #{bert_base_uncased_forward.11} parent=0 // pred_check
    _
  $region7: #{bert_base_uncased_forward.11} parent=0 // pred_check_branch
    %11 = sbr.rel (0) target = $region9
  $region8: #{bert_base_uncased_forward.11} parent=0 // pred_region
    _
  $region9: #{bert_base_uncased_forward.11} parent=0 // pred_fallthru
    _
  // Predicated region
  $region10: #{bert_base_uncased_forward.11} parent=0 // pred_check
    _
  $region11: #{bert_base_uncased_forward.11} parent=0 // pred_check_branch
    %13 = sbr.rel (0) target = $region13
  $region12: #{bert_base_uncased_forward.11} parent=0 // pred_region
    _
  $region13: #{bert_base_uncased_forward.11} parent=0 // pred_fallthru
    _
  %p15 = scmp.eq.s32.totalorder 0, 0
  // Predicated region
  $region14: #{bert_base_uncased_forward.11} parent=0 // pred_check
    %p16 = pneg %p15
  $region15: #{bert_base_uncased_forward.11} parent=0 // pred_check_branch
    %18 = sbr.rel (%p16) target = $region17
  $region16: #{bert_base_uncased_forward.11} parent=0 // pred_region
    %vm19 = vcmask 785408
    %20 = vst.msk [vmem:[#allocation2] sm:$0xff] %vm19, 0.0
    %21 = vst.msk [vmem:[#allocation2 + $0x8] sm:$0xff] %vm19, 0.0
  $region17: #{bert_base_uncased_forward.11} parent=0 // pred_fallthru
    _
  %v22 = vld [vmem:[#allocation2] sm:$0xff]
  %v23 = vld [vmem:[#allocation2 + $0x8] sm:$0xff]
  %v24 = vld [vmem:[%s0] sm:$0xf]
  %v25 = vld [vmem:[%s0 + $0x4] sm:$0xf]
  %v26 = vld [vmem:[%s1] sm:$0xf]
  %v27 = vld [vmem:[%s1 + $0x4] sm:$0xf]
  %v28 = vld [vmem:[%s1 + $0x8] sm:$0xf]
  %v29 = vld [vmem:[%s1 + $0xc] sm:$0xf]
  %v32 = vunpack.c.l.b16 %v24
  %v33 = vunpack.c.l.b16 %v25
  %v34 = vpack.c.b16 %v33, %v32
  %v39 = vunpack.c.l.b16 %v26
  %v40 = vunpack.c.l.b16 %v27
  %v41 = vunpack.c.l.b16 %v28
  %v42 = vunpack.c.l.b16 %v29
  %v43 = vpack.c.b16 %v40, %v39
  %v44 = vpack.c.b16 %v42, %v41
  %vm47 = vcmask 261120
  %v49 = vsel %vm47, %v34, 0
  %51 = vmatprep.subr.bf16.mxu0 0
  %52 = vmatpush1.bf16.msra.mxu0 %v43
  %53 = vmatprep.subr.bf16.mxu0 0
  %54 = vmatpush1.bf16.msra.mxu0 %v44
  %55 = vmatprep.subr.bf16.mxu0 0
  %56 = vmatpush1.bf16.msra.mxu0 0
  %57 = vmatprep.subr.bf16.mxu0 0
  %58 = vmatpush1.bf16.msra.mxu0 0
  %59 = vmatprep.subr.bf16.mxu0 0
  %60 = vmatpush1.bf16.msra.mxu0 0
  %61 = vmatprep.subr.bf16.mxu0 0
  %62 = vmatpush1.bf16.msra.mxu0 0
  %63 = vmatprep.subr.bf16.mxu0 0
  %64 = vmatpush1.bf16.msra.mxu0 0
  %65 = vmatprep.subr.bf16.mxu0 0
  %66 = vmatpush1.bf16.msra.mxu0 0
  %67 = vmatprep.subr.bf16.mxu0 0
  %68 = vmatpush1.bf16.msra.mxu0 0
  %69 = vmatprep.subr.bf16.mxu0 0
  %70 = vmatpush1.bf16.msra.mxu0 0
  %71 = vmatprep.subr.bf16.mxu0 0
  %72 = vmatpush1.bf16.msra.mxu0 0
  %73 = vmatprep.subr.bf16.mxu0 0
  %74 = vmatpush1.bf16.msra.mxu0 0
  %75 = vmatprep.subr.bf16.mxu0 0
  %76 = vmatpush1.bf16.msra.mxu0 0
  %77 = vmatprep.subr.bf16.mxu0 0
  %78 = vmatpush1.bf16.msra.mxu0 0
  %79 = vmatprep.subr.bf16.mxu0 0
  %80 = vmatpush1.bf16.msra.mxu0 0
  %81 = vmatprep.subr.bf16.mxu0 0
  %82 = vmatpush1.bf16.msra.mxu0 0
  %83 = vmatprep.mubr.bf16.mxu0 0
  %84 = vmatmul.mubr.bf16.gmra.mrb[0].mxu0 %v49
  %v85 = vpop.f32.mrb[0].mxu0
  %v86 = vadd.f32 0.0, %v85
  %v87 = vpop.f32.mrb[0].mxu0
  %v88 = vpop.f32.mrb[0].mxu0
  %v89 = vadd.f32 0.0, %v88
  %v90 = vpop.f32.mrb[0].mxu0
  %91 = vdwg.mxu0
  %v92 = vadd.f32 %v22, %v86
  %v93 = vadd.f32 %v23, %v89
  %vm94 = vcmask 785408
  %95 = vst.msk [vmem:[#allocation2] sm:$0xff] %vm94, %v92
  %96 = vst.msk [vmem:[#allocation2 + $0x8] sm:$0xff] %vm94, %v93
  // Predicated region
  $region18: #{bert_base_uncased_forward.11} parent=0 // pred_check
    %p97 = pneg %p15
  $region19: #{bert_base_uncased_forward.11} parent=0 // pred_check_branch
    %99 = sbr.rel (%p97) target = $region21
  $region20: #{bert_base_uncased_forward.11} parent=0 // pred_region
    %v100 = vld [vmem:[#allocation2] sm:$0xff]
    %v101 = vld [vmem:[#allocation2 + $0x8] sm:$0xff]
    %v102 = vld [vmem:[%s2] sm:$0x1]
    %v104 = vlaneseq
    %v105 = vshrl.u32 %v104, 7
    %v106 = vsub.s32 0, %v105
    %v107 = vrot.slane %v102, %v106
    %v109 = vadd.f32 %v100, %v107
    %v110 = vadd.f32 %v101, %v107
    %v111 = vpack.c.bf16 %v110, %v109
    %v113 = vunpack.c.l.b16 %v111
    %v114 = vunpack.c.h.b16 %v111
    %v115 = vpack.c.b16 %v113, %v113
    %v116 = vpack.c.b16 %v114, %v114
    %vm119 = vcmask 781312
    %120 = vst.msk [vmem:[%s3] sm:$0xf] %vm119, %v115
    %121 = vst.msk [vmem:[%s3 + $0x4] sm:$0xf] %vm119, %v116
  $region21: #{bert_base_uncased_forward.11} parent=0 // pred_fallthru
    _
  // Predicated region
  $region22: #{bert_base_uncased_forward.11} parent=0 // pred_check
    _
  $region23: #{bert_base_uncased_forward.11} parent=0 // pred_check_branch
    %123 = sbr.rel (0) target = $region25
  $region24: #{bert_base_uncased_forward.11} parent=0 // pred_region
    _
  $region25: #{bert_base_uncased_forward.11} parent=0 // pred_fallthru
    _
  // Predicated region
  $region26: #{bert_base_uncased_forward.11} parent=0 // pred_check
    _
  $region27: #{bert_base_uncased_forward.11} parent=0 // pred_check_branch
    %125 = sbr.rel (0) target = $region29
  $region28: #{bert_base_uncased_forward.11} parent=0 // pred_region
    _
  $region29: #{bert_base_uncased_forward.11} parent=0 // pred_fallthru
    _

// kernel: bert_base_uncased_forward.10
$region0: #{bert_base_uncased_forward.10}
  #allocation0 [shape = 'u32[]', space=smem, size = 0x4, offset = 0x4, fixed_abs, tag = 'smem constant byte address 0x4 - core index']
  #allocation1 [shape = 'u32[144,128]{1,0:T(1,128)}', space=vmem, size = 0x12000, scoped, tag = 'internal scratch']
  %s0 = inlined_call_operand.vmem [shape: f32[2,8,32], index: 0, kind: input, shape index: {}]
  %s1 = inlined_call_operand.vmem [shape: f32[2,8,32], index: 1, kind: input, shape index: {}]
  %s2 = inlined_call_operand.vmem [shape: f32[8,32], index: 2, kind: input, shape index: {}]
  %s3 = inlined_call_operand.vmem [shape: f32[1,32], index: 3, kind: input, shape index: {}]
  %s4 = inlined_call_operand.vmem [shape: f32[1,32], index: 4, kind: input, shape index: {}]
  %s5 = inlined_call_operand.vmem [shape: bf16[2,8,32], index: 5, kind: output, shape index: {}]
  %s6 = sld [smem:[#allocation0]]
  $region53: #{bert_base_uncased_forward.10} parent=0
    _
  %s8 = ssub.s32 1, %s6
  %s9 = scalar_select 0, %s8, %s6
  loop: start=0, step=1, limit=4
  $region2: #{bert_base_uncased_forward.10} parent=0 // loop_pre_header
    _
  $region3: #{bert_base_uncased_forward.10} parent=0 // loop_header
    %s11 = sphi 0, %s15
    %p12 = scmp.ge.s32.totalorder %s11, 4
    %s21 = sphi 0, %s23
    %s24 = sphi 0, %s21
    %s25 = sphi 0, %s24
    %s41 = sphi 0, %s25
    %s47 = sphi 0, %s49
    %s50 = sphi 0, %s47
    %s51 = sphi 0, %s50
    %s67 = sphi 0, %s51
    %s71 = sphi 0, %s71
    %s73 = sphi 0, %s71
    %s74 = sphi 0, %s73
    %s88 = sphi 0, %s74
    %s92 = sphi 0, %s92
    %s94 = sphi 0, %s92
    %s95 = sphi 0, %s94
    %s109 = sphi 0, %s95
    %s113 = sphi 0, %s113
    %s115 = sphi 0, %s113
    %s116 = sphi 0, %s115
    %s130 = sphi 0, %s116
    %s136 = sphi 0, %s138
    %s139 = sphi 0, %s136
    %s140 = sphi 0, %s139
    %s156 = sphi 0, %s140
  $region4: #{bert_base_uncased_forward.10} parent=0 // loop_header_branch
    %14 = sbr.rel (%p12) target = $region8
  $region5: #{bert_base_uncased_forward.10} parent=0 // loop_body
    %s16 = ssub.s32 %s11, 1
    %s17 = ssub.s32 %s11, 2
    %s18 = sadd.s32 %s11, 1
    %s19 = ssub.s32 %s11, %s18
    %p20 = scmp.eq.s32.totalorder %s19, 0
    %s22 = sadd.s32 %s21, 1
    %s23 = scalar_select %p20, %s21, %s22
    %p26 = pneg %p20
    %p27 = scmp.eq.s32.totalorder %s11, 1
    %p28 = por %p26, %p27
    %p29 = scmp.ne.s32.totalorder %s21, %s24
    %p30 = scmp.eq.s32.totalorder %s11, 0
    %p31 = por %p29, %p30
    %p32 = scmp.ne.s32.totalorder %s21, %s24
    %p33 = scmp.eq.s32.totalorder %s16, 1
    %p34 = por %p32, %p33
    %p35 = scmp.ne.s32.totalorder %s24, %s25
    %p36 = scmp.eq.s32.totalorder %s16, 0
    %p37 = por %p35, %p36
    %p38 = scmp.ne.s32.totalorder %s24, %s25
    %p39 = scmp.eq.s32.totalorder %s17, 1
    %p40 = por %p38, %p39
    %p42 = scmp.ne.s32.totalorder %s25, %s41
    %p43 = scmp.eq.s32.totalorder %s17, 0
    %p44 = por %p42, %p43
    %s45 = ssub.s32 %s11, %s18
    %p46 = scmp.eq.s32.totalorder %s45, 0
    %s48 = sadd.s32 %s47, 1
    %s49 = scalar_select %p46, %s47, %s48
    %p52 = pneg %p46
    %p53 = scmp.eq.s32.totalorder %s11, 1
    %p54 = por %p52, %p53
    %p55 = scmp.ne.s32.totalorder %s47, %s50
    %p56 = scmp.eq.s32.totalorder %s11, 0
    %p57 = por %p55, %p56
    %p58 = scmp.ne.s32.totalorder %s47, %s50
    %p59 = scmp.eq.s32.totalorder %s16, 1
    %p60 = por %p58, %p59
    %p61 = scmp.ne.s32.totalorder %s50, %s51
    %p62 = scmp.eq.s32.totalorder %s16, 0
    %p63 = por %p61, %p62
    %p64 = scmp.ne.s32.totalorder %s50, %s51
    %p65 = scmp.eq.s32.totalorder %s17, 1
    %p66 = por %p64, %p65
    %p68 = scmp.ne.s32.totalorder %s51, %s67
    %p69 = scmp.eq.s32.totalorder %s17, 0
    %p70 = por %p68, %p69
    %s72 = sadd.s32 %s71, 1
    %p75 = scmp.eq.s32.totalorder %s11, 1
    %p76 = scmp.ne.s32.totalorder %s71, %s73
    %p77 = scmp.eq.s32.totalorder %s11, 0
    %p78 = por %p76, %p77
    %p79 = scmp.ne.s32.totalorder %s71, %s73
    %p80 = scmp.eq.s32.totalorder %s16, 1
    %p81 = por %p79, %p80
    %p82 = scmp.ne.s32.totalorder %s73, %s74
    %p83 = scmp.eq.s32.totalorder %s16, 0
    %p84 = por %p82, %p83
    %p85 = scmp.ne.s32.totalorder %s73, %s74
    %p86 = scmp.eq.s32.totalorder %s17, 1
    %p87 = por %p85, %p86
    %p89 = scmp.ne.s32.totalorder %s74, %s88
    %p90 = scmp.eq.s32.totalorder %s17, 0
    %p91 = por %p89, %p90
    %s93 = sadd.s32 %s92, 1
    %p96 = scmp.eq.s32.totalorder %s11, 1
    %p97 = scmp.ne.s32.totalorder %s92, %s94
    %p98 = scmp.eq.s32.totalorder %s11, 0
    %p99 = por %p97, %p98
    %p100 = scmp.ne.s32.totalorder %s92, %s94
    %p101 = scmp.eq.s32.totalorder %s16, 1
    %p102 = por %p100, %p101
    %p103 = scmp.ne.s32.totalorder %s94, %s95
    %p104 = scmp.eq.s32.totalorder %s16, 0
    %p105 = por %p103, %p104
    %p106 = scmp.ne.s32.totalorder %s94, %s95
    %p107 = scmp.eq.s32.totalorder %s17, 1
    %p108 = por %p106, %p107
    %p110 = scmp.ne.s32.totalorder %s95, %s109
    %p111 = scmp.eq.s32.totalorder %s17, 0
    %p112 = por %p110, %p111
    %s114 = sadd.s32 %s113, 1
    %p117 = scmp.eq.s32.totalorder %s11, 1
    %p118 = scmp.ne.s32.totalorder %s113, %s115
    %p119 = scmp.eq.s32.totalorder %s11, 0
    %p120 = por %p118, %p119
    %p121 = scmp.ne.s32.totalorder %s113, %s115
    %p122 = scmp.eq.s32.totalorder %s16, 1
    %p123 = por %p121, %p122
    %p124 = scmp.ne.s32.totalorder %s115, %s116
    %p125 = scmp.eq.s32.totalorder %s16, 0
    %p126 = por %p124, %p125
    %p127 = scmp.ne.s32.totalorder %s115, %s116
    %p128 = scmp.eq.s32.totalorder %s17, 1
    %p129 = por %p127, %p128
    %p131 = scmp.ne.s32.totalorder %s116, %s130
    %p132 = scmp.eq.s32.totalorder %s17, 0
    %p133 = por %p131, %p132
    %s134 = ssub.s32 %s11, %s18
    %p135 = scmp.eq.s32.totalorder %s134, 0
    %s137 = sadd.s32 %s136, 1
    %s138 = scalar_select %p135, %s136, %s137
    %p141 = pneg %p135
    %p142 = scmp.eq.s32.totalorder %s11, 1
    %p143 = por %p141, %p142
    %p144 = scmp.ne.s32.totalorder %s136, %s139
    %p145 = scmp.eq.s32.totalorder %s11, 0
    %p146 = por %p144, %p145
    %p147 = scmp.ne.s32.totalorder %s136, %s139
    %p148 = scmp.eq.s32.totalorder %s16, 1
    %p149 = por %p147, %p148
    %p150 = scmp.ne.s32.totalorder %s139, %s140
    %p151 = scmp.eq.s32.totalorder %s16, 0
    %p152 = por %p150, %p151
    %p153 = scmp.ne.s32.totalorder %s139, %s140
    %p154 = scmp.eq.s32.totalorder %s17, 1
    %p155 = por %p153, %p154
    %p157 = scmp.ne.s32.totalorder %s140, %s156
    %p158 = scmp.eq.s32.totalorder %s17, 0
    %p159 = por %p157, %p158
    %p160 = scmp.le.s32.totalorder 1, %s11
    %p161 = scmp.lt.s32.totalorder %s11, 3
    %p162 = pnand %p160, %p161
    %p163 = pneg %p162
    // Predicated region
    $region9: #{bert_base_uncased_forward.10} parent=5 // pred_check
      _
    $region10: #{bert_base_uncased_forward.10} parent=5 // pred_check_branch
      %165 = sbr.rel (%p162) target = $region12
    $region11: #{bert_base_uncased_forward.10} parent=5 // pred_region
      %s166 = ssub.s32 %s11, 1
      // Predicated region
      $region13: #{bert_base_uncased_forward.10} parent=11 // pred_check
        %p167 = pneg %p84
      $region14: #{bert_base_uncased_forward.10} parent=11 // pred_check_branch
        %169 = sbr.rel (%p167) target = $region16
      $region15: #{bert_base_uncased_forward.10} parent=11 // pred_region
        _
      $region16: #{bert_base_uncased_forward.10} parent=11 // pred_fallthru
        _
      // Predicated region
      $region17: #{bert_base_uncased_forward.10} parent=11 // pred_check
        %p170 = pneg %p105
      $region18: #{bert_base_uncased_forward.10} parent=11 // pred_check_branch
        %172 = sbr.rel (%p170) target = $region20
      $region19: #{bert_base_uncased_forward.10} parent=11 // pred_region
        _
      $region20: #{bert_base_uncased_forward.10} parent=11 // pred_fallthru
        _
      // Predicated region
      $region21: #{bert_base_uncased_forward.10} parent=11 // pred_check
        %p173 = pneg %p126
      $region22: #{bert_base_uncased_forward.10} parent=11 // pred_check_branch
        %175 = sbr.rel (%p173) target = $region24
      $region23: #{bert_base_uncased_forward.10} parent=11 // pred_region
        _
      $region24: #{bert_base_uncased_forward.10} parent=11 // pred_fallthru
        _
    $region12: #{bert_base_uncased_forward.10} parent=5 // pred_fallthru
      _
    %p176 = scmp.lt.s32.totalorder %s11, 2
    // Predicated region
    $region25: #{bert_base_uncased_forward.10} parent=5 // pred_check
      %p177 = pneg %p176
    $region26: #{bert_base_uncased_forward.10} parent=5 // pred_check_branch
      %179 = sbr.rel (%p177) target = $region28
    $region27: #{bert_base_uncased_forward.10} parent=5 // pred_region
      // Predicated region
      $region29: #{bert_base_uncased_forward.10} parent=27 // pred_check
        %p180 = pneg %p31
      $region30: #{bert_base_uncased_forward.10} parent=27 // pred_check_branch
        %182 = sbr.rel (%p180) target = $region32
      $region31: #{bert_base_uncased_forward.10} parent=27 // pred_region
        %p183 = scmp.lt.s32.totalorder %s11, 1
        %s184 = scalar_select %p183, %s11, 1
        %s185 = smul.addr %s184, 8
        %s186 = scalar_lea.vmem %s0, %s185
      $region32: #{bert_base_uncased_forward.10} parent=27 // pred_fallthru
        _
      // Predicated region
      $region33: #{bert_base_uncased_forward.10} parent=27 // pred_check
        %p187 = pneg %p57
      $region34: #{bert_base_uncased_forward.10} parent=27 // pred_check_branch
        %189 = sbr.rel (%p187) target = $region36
      $region35: #{bert_base_uncased_forward.10} parent=27 // pred_region
        %p190 = scmp.lt.s32.totalorder %s11, 1
        %s191 = scalar_select %p190, %s11, 1
        %s192 = smul.addr %s191, 8
        %s193 = scalar_lea.vmem %s1, %s192
      $region36: #{bert_base_uncased_forward.10} parent=27 // pred_fallthru
        _
    $region28: #{bert_base_uncased_forward.10} parent=5 // pred_fallthru
      _
    %p194 = scmp.le.s32.totalorder 1, %s11
    %p195 = scmp.lt.s32.totalorder %s11, 3
    %p196 = pnand %p194, %p195
    %p197 = pneg %p196
    // Predicated region
    $region37: #{bert_base_uncased_forward.10} parent=5 // pred_check
      _
    $region38: #{bert_base_uncased_forward.10} parent=5 // pred_check_branch
      %199 = sbr.rel (%p196) target = $region40
    $region39: #{bert_base_uncased_forward.10} parent=5 // pred_region
      %s200 = ssub.s32 %s11, 1
      %p201 = scmp.lt.s32.totalorder %s16, 1
      %s202 = scalar_select %p201, %s16, 1
      %s203 = smul.addr %s202, 8
      %s204 = scalar_lea.vmem %s0, %s203
      %p205 = pneg %p37
      %p206 = pneg %p34
      %p207 = scmp.lt.s32.totalorder %s16, 1
      %s208 = scalar_select %p207, %s16, 1
      %s209 = smul.addr %s208, 8
      %s210 = scalar_lea.vmem %s1, %s209
      %p211 = pneg %p63
      %p212 = pneg %p60
      %p213 = pneg %p84
      %p214 = pneg %p81
      %p215 = pneg %p105
      %p216 = pneg %p102
      %p217 = pneg %p126
      %p218 = pneg %p123
      %p219 = pneg %p152
      %p220 = pneg %p149
      %p221 = scmp.lt.s32.totalorder %s16, 1
      %s222 = scalar_select %p221, %s16, 1
      %s223 = smul.addr %s222, 4
      %s224 = scalar_lea.vmem %s5, %s223
      %p225 = scmp.lt.s32.totalorder %s16, 1
      %s226 = scalar_select %p225, %s16, 1
      %s227 = smul.addr %s226, 8
      %s228 = scalar_lea.vmem %s0, %s227
      %p229 = scmp.lt.s32.totalorder %s16, 1
      %s230 = scalar_select %p229, %s16, 1
      %s231 = smul.addr %s230, 8
      %s232 = scalar_lea.vmem %s1, %s231
      %p233 = scmp.lt.s32.totalorder %s16, 1
      %s234 = scalar_select %p233, %s16, 1
      %s235 = smul.addr %s234, 4
      %s236 = scalar_lea.vmem %s5, %s235
      %v237 = vld [vmem:[%s228] sm:$0xff]
      %v238 = vld [vmem:[%s232] sm:$0xff]
      %v239 = vadd.f32 %v237, %v238
      %v240 = vld [vmem:[%s2] sm:$0xff]
      %v241 = vadd.f32 %v239, %v240
      %vm242 = vcmask 261120
      %v243 = vsel %vm242, %v241, 0.0
      %244 = vadd.xlane.f32.xlu0 %v243
      %v245 = vpop.xlane.xlu0 %244
      %v246 = vrcp.pop 32.0
      %v247 = vmul.f32 %v245, %v246
      %v248 = vsub.f32 %v241, %v247
      %v249 = vmul.f32 %v248, %v248
      %v250 = vsel %vm242, %v249, 0.0
      %251 = vadd.xlane.f32.xlu0 %v250
      %v252 = vpop.xlane.xlu0 %251
      %v253 = vmul.f32 %v252, %v246
      %v254 = vadd.f32 %v253, 1e-12
      %v255 = vrsqrt.pop %v254
      %v256 = vmul.f32 %v248, %v255
      %v257 = vld [vmem:[%s3] sm:$0x1]
      %v259 = vlaneseq
      %v260 = vshrl.u32 %v259, 7
      %v261 = vsub.s32 0, %v260
      %v262 = vrot.slane %v257, %v261
      %v264 = vmul.f32 %v256, %v262
      %v265 = vld [vmem:[%s4] sm:$0x1]
      %v267 = vlaneseq
      %v268 = vshrl.u32 %v267, 7
      %v269 = vsub.s32 0, %v268
      %v270 = vrot.slane %v265, %v269
      %v272 = vadd.f32 %v264, %v270
      %v273 = vpack.c.bf16 %v272, %v272
      %vm274 = vcmask 257024
      %275 = vst.msk [vmem:[%s236] sm:$0xf] %vm274, %v273
      %p276 = scmp.lt.s32.totalorder %s16, 1
      %s277 = scalar_select %p276, %s16, 1
      %s278 = smul.addr %s277, 4
      %s279 = scalar_lea.vmem %s5, %s278
      // Predicated region
      $region41: #{bert_base_uncased_forward.10} parent=39 // pred_check
        %p280 = pneg %p149
      $region42: #{bert_base_uncased_forward.10} parent=39 // pred_check_branch
        %282 = sbr.rel (%p280) target = $region44
      $region43: #{bert_base_uncased_forward.10} parent=39 // pred_region
        _
      $region44: #{bert_base_uncased_forward.10} parent=39 // pred_fallthru
        _
    $region40: #{bert_base_uncased_forward.10} parent=5 // pred_fallthru
      _
    %p283 = scmp.le.s32.totalorder 2, %s11
    // Predicated region
    $region45: #{bert_base_uncased_forward.10} parent=5 // pred_check
      %p284 = pneg %p283
    $region46: #{bert_base_uncased_forward.10} parent=5 // pred_check_branch
      %286 = sbr.rel (%p284) target = $region48
    $region47: #{bert_base_uncased_forward.10} parent=5 // pred_region
      %s287 = ssub.s32 %s11, 2
      // Predicated region
      $region49: #{bert_base_uncased_forward.10} parent=47 // pred_check
        %p288 = pneg %p155
      $region50: #{bert_base_uncased_forward.10} parent=47 // pred_check_branch
        %290 = sbr.rel (%p288) target = $region52
      $region51: #{bert_base_uncased_forward.10} parent=47 // pred_region
        %p291 = scmp.lt.s32.totalorder %s17, 1
        %s292 = scalar_select %p291, %s17, 1
        %s293 = smul.addr %s292, 4
        %s294 = scalar_lea.vmem %s5, %s293
      $region52: #{bert_base_uncased_forward.10} parent=47 // pred_fallthru
        _
    $region48: #{bert_base_uncased_forward.10} parent=5 // pred_fallthru
      _
  $region6: #{bert_base_uncased_forward.10} parent=0 // loop_footer
    %s15 = sadd.s32 1, %s11
  $region7: #{bert_base_uncased_forward.10} parent=0 // loop_footer_branch
    %10 = sbr.rel target = $region3
  $region8: #{bert_base_uncased_forward.10} parent=0 // loop_exit
    _

// kernel: bert_base_uncased_forward.13
$region0: #{bert_base_uncased_forward.13}
  #allocation0 [shape = 'u32[]', space=smem, size = 0x4, offset = 0x4, fixed_abs, tag = 'smem constant byte address 0x4 - core index']
  #allocation1 [shape = 'u32[144,128]{1,0:T(1,128)}', space=vmem, size = 0x12000, scoped, tag = 'internal scratch']
  %s0 = inlined_call_operand.vmem [shape: bf16[16,32], index: 0, kind: input, shape index: {}]
  %s1 = inlined_call_operand.vmem [shape: bf16[16,32], index: 1, kind: input, shape index: {}]
  %s2 = inlined_call_operand.vmem [shape: bf16[32,32], index: 2, kind: input, shape index: {}]
  %s3 = inlined_call_operand.vmem [shape: f32[1,32], index: 3, kind: input, shape index: {}]
  %s4 = inlined_call_operand.vmem [shape: f32[1,32], index: 4, kind: input, shape index: {}]
  %s5 = inlined_call_operand.vmem [shape: f32[1,32], index: 5, kind: input, shape index: {}]
  %s6 = inlined_call_operand.vmem [shape: bf16[16,32], index: 6, kind: output, shape index: {}]
  %s7 = sld [smem:[#allocation0]]
  $region34: #{bert_base_uncased_forward.13} parent=0
    _
  %s9 = ssub.s32 1, %s7
  %s10 = scalar_select 0, %s9, %s7
  // Predicated region
  $region2: #{bert_base_uncased_forward.13} parent=0 // pred_check
    _
  $region3: #{bert_base_uncased_forward.13} parent=0 // pred_check_branch
    %12 = sbr.rel (0) target = $region5
  $region4: #{bert_base_uncased_forward.13} parent=0 // pred_region
    _
  $region5: #{bert_base_uncased_forward.13} parent=0 // pred_fallthru
    _
  // Predicated region
  $region6: #{bert_base_uncased_forward.13} parent=0 // pred_check
    _
  $region7: #{bert_base_uncased_forward.13} parent=0 // pred_check_branch
    %14 = sbr.rel (0) target = $region9
  $region8: #{bert_base_uncased_forward.13} parent=0 // pred_region
    _
  $region9: #{bert_base_uncased_forward.13} parent=0 // pred_fallthru
    _
  // Predicated region
  $region10: #{bert_base_uncased_forward.13} parent=0 // pred_check
    _
  $region11: #{bert_base_uncased_forward.13} parent=0 // pred_check_branch
    %16 = sbr.rel (0) target = $region13
  $region12: #{bert_base_uncased_forward.13} parent=0 // pred_region
    _
  $region13: #{bert_base_uncased_forward.13} parent=0 // pred_fallthru
    _
  // Predicated region
  $region14: #{bert_base_uncased_forward.13} parent=0 // pred_check
    _
  $region15: #{bert_base_uncased_forward.13} parent=0 // pred_check_branch
    %18 = sbr.rel (0) target = $region17
  $region16: #{bert_base_uncased_forward.13} parent=0 // pred_region
    _
  $region17: #{bert_base_uncased_forward.13} parent=0 // pred_fallthru
    _
  // Predicated region
  $region18: #{bert_base_uncased_forward.13} parent=0 // pred_check
    _
  $region19: #{bert_base_uncased_forward.13} parent=0 // pred_check_branch
    %20 = sbr.rel (0) target = $region21
  $region20: #{bert_base_uncased_forward.13} parent=0 // pred_region
    _
  $region21: #{bert_base_uncased_forward.13} parent=0 // pred_fallthru
    _
  // Predicated region
  $region22: #{bert_base_uncased_forward.13} parent=0 // pred_check
    _
  $region23: #{bert_base_uncased_forward.13} parent=0 // pred_check_branch
    %22 = sbr.rel (0) target = $region25
  $region24: #{bert_base_uncased_forward.13} parent=0 // pred_region
    _
  $region25: #{bert_base_uncased_forward.13} parent=0 // pred_fallthru
    _
  %v24 = vld [vmem:[%s0] sm:$0xf]
  %v25 = vld [vmem:[%s0 + $0x4] sm:$0xf]
  %v26 = vld [vmem:[%s2] sm:$0xf]
  %v27 = vld [vmem:[%s2 + $0x4] sm:$0xf]
  %v28 = vld [vmem:[%s2 + $0x8] sm:$0xf]
  %v29 = vld [vmem:[%s2 + $0xc] sm:$0xf]
  %v30 = vld [vmem:[%s3] sm:$0x1]
  %v32 = vlaneseq
  %v33 = vshrl.u32 %v32, 7
  %v34 = vsub.s32 0, %v33
  %v35 = vrot.slane %v30, %v34
  %v39 = vunpack.c.l.b16 %v24
  %v40 = vunpack.c.l.b16 %v25
  %v41 = vpack.c.b16 %v40, %v39
  %v46 = vunpack.c.l.b16 %v26
  %v47 = vunpack.c.l.b16 %v27
  %v48 = vunpack.c.l.b16 %v28
  %v49 = vunpack.c.l.b16 %v29
  %v50 = vpack.c.b16 %v47, %v46
  %v51 = vpack.c.b16 %v49, %v48
  %vm54 = vcmask 261120
  %v56 = vsel %vm54, %v41, 0
  %58 = vmatprep.subr.bf16.mxu0 0
  %59 = vmatpush1.bf16.msra.mxu0 %v50
  %60 = vmatprep.subr.bf16.mxu0 0
  %61 = vmatpush1.bf16.msra.mxu0 %v51
  %62 = vmatprep.subr.bf16.mxu0 0
  %63 = vmatpush1.bf16.msra.mxu0 0
  %64 = vmatprep.subr.bf16.mxu0 0
  %65 = vmatpush1.bf16.msra.mxu0 0
  %66 = vmatprep.subr.bf16.mxu0 0
  %67 = vmatpush1.bf16.msra.mxu0 0
  %68 = vmatprep.subr.bf16.mxu0 0
  %69 = vmatpush1.bf16.msra.mxu0 0
  %70 = vmatprep.subr.bf16.mxu0 0
  %71 = vmatpush1.bf16.msra.mxu0 0
  %72 = vmatprep.subr.bf16.mxu0 0
  %73 = vmatpush1.bf16.msra.mxu0 0
  %74 = vmatprep.subr.bf16.mxu0 0
  %75 = vmatpush1.bf16.msra.mxu0 0
  %76 = vmatprep.subr.bf16.mxu0 0
  %77 = vmatpush1.bf16.msra.mxu0 0
  %78 = vmatprep.subr.bf16.mxu0 0
  %79 = vmatpush1.bf16.msra.mxu0 0
  %80 = vmatprep.subr.bf16.mxu0 0
  %81 = vmatpush1.bf16.msra.mxu0 0
  %82 = vmatprep.subr.bf16.mxu0 0
  %83 = vmatpush1.bf16.msra.mxu0 0
  %84 = vmatprep.subr.bf16.mxu0 0
  %85 = vmatpush1.bf16.msra.mxu0 0
  %86 = vmatprep.subr.bf16.mxu0 0
  %87 = vmatpush1.bf16.msra.mxu0 0
  %88 = vmatprep.subr.bf16.mxu0 0
  %89 = vmatpush1.bf16.msra.mxu0 0
  %90 = vmatprep.mubr.bf16.mxu0 0
  %91 = vmatmul.mubr.bf16.gmra.mrb[0].mxu0 %v56
  %v92 = vpop.f32.mrb[0].mxu0
  %v93 = vadd.f32 %v35, %v92
  %v94 = vpop.f32.mrb[0].mxu0
  %v95 = vpop.f32.mrb[0].mxu0
  %v96 = vadd.f32 %v35, %v95
  %v97 = vpop.f32.mrb[0].mxu0
  %98 = vdwg.mxu0
  %v99 = vld [vmem:[%s1] sm:$0xf]
  %v100 = vld [vmem:[%s1 + $0x4] sm:$0xf]
  %v101 = vunpack.c.l.bf16 %v99
  %v102 = vunpack.c.l.bf16 %v100
  %v103 = vadd.f32 %v93, %v101
  %v104 = vadd.f32 %v96, %v102
  %v105 = vsel %vm54, %v103, 0.0
  %106 = vadd.xlane.f32.xlu0 %v105
  %v107 = vpop.xlane.xlu0 %106
  %v108 = vsel %vm54, %v104, 0.0
  %109 = vadd.xlane.f32.xlu0 %v108
  %v110 = vpop.xlane.xlu0 %109
  %v111 = vrcp.pop 32.0
  %v112 = vmul.f32 %v107, %v111
  %v113 = vmul.f32 %v110, %v111
  %v114 = vsub.f32 %v103, %v112
  %v115 = vsub.f32 %v104, %v113
  %v116 = vmul.f32 %v114, %v114
  %v117 = vmul.f32 %v115, %v115
  %v118 = vsel %vm54, %v116, 0.0
  %119 = vadd.xlane.f32.xlu0 %v118
  %v120 = vpop.xlane.xlu0 %119
  %v121 = vsel %vm54, %v117, 0.0
  %122 = vadd.xlane.f32.xlu0 %v121
  %v123 = vpop.xlane.xlu0 %122
  %v124 = vmul.f32 %v120, %v111
  %v125 = vmul.f32 %v123, %v111
  %v126 = vadd.f32 %v124, 1e-12
  %v127 = vadd.f32 %v125, 1e-12
  %v128 = vrsqrt.pop %v126
  %v129 = vrsqrt.pop %v127
  %v130 = vmul.f32 %v114, %v128
  %v131 = vmul.f32 %v115, %v129
  %v132 = vld [vmem:[%s4] sm:$0x1]
  %v134 = vlaneseq
  %v135 = vshrl.u32 %v134, 7
  %v136 = vsub.s32 0, %v135
  %v137 = vrot.slane %v132, %v136
  %v139 = vmul.f32 %v130, %v137
  %v140 = vmul.f32 %v131, %v137
  %v141 = vld [vmem:[%s5] sm:$0x1]
  %v143 = vlaneseq
  %v144 = vshrl.u32 %v143, 7
  %v145 = vsub.s32 0, %v144
  %v146 = vrot.slane %v141, %v145
  %v148 = vadd.f32 %v139, %v146
  %v149 = vadd.f32 %v140, %v146
  %v150 = vpack.c.bf16 %v149, %v148
  %v152 = vunpack.c.l.b16 %v150
  %v153 = vunpack.c.h.b16 %v150
  %v154 = vpack.c.b16 %v152, %v152
  %v155 = vpack.c.b16 %v153, %v153
  %vm158 = vcmask 257024
  %159 = vst.msk [vmem:[%s6] sm:$0xf] %vm158, %v154
  %160 = vst.msk [vmem:[%s6 + $0x4] sm:$0xf] %vm158, %v155
  // Predicated region
  $region26: #{bert_base_uncased_forward.13} parent=0 // pred_check
    _
  $region27: #{bert_base_uncased_forward.13} parent=0 // pred_check_branch
    %162 = sbr.rel (0) target = $region29
  $region28: #{bert_base_uncased_forward.13} parent=0 // pred_region
    _
  $region29: #{bert_base_uncased_forward.13} parent=0 // pred_fallthru
    _
  // Predicated region
  $region30: #{bert_base_uncased_forward.13} parent=0 // pred_check
    _
  $region31: #{bert_base_uncased_forward.13} parent=0 // pred_check_branch
    %164 = sbr.rel (0) target = $region33
  $region32: #{bert_base_uncased_forward.13} parent=0 // pred_region
    _
  $region33: #{bert_base_uncased_forward.13} parent=0 // pred_fallthru
    _

// kernel: bert_base_uncased_forward.12
$region0: #{bert_base_uncased_forward.12}
  #allocation0 [shape = 'u32[]', space=smem, size = 0x4, offset = 0x4, fixed_abs, tag = 'smem constant byte address 0x4 - core index']
  #allocation1 [shape = 'u32[144,128]{1,0:T(1,128)}', space=vmem, size = 0x12000, scoped, tag = 'internal scratch']
  %s0 = inlined_call_operand.vmem [shape: bf16[2,8,96], index: 0, kind: input, shape index: {}]
  %s1 = inlined_call_operand.vmem [shape: f32[2,1,8], index: 1, kind: input, shape index: {}]
  %s2 = inlined_call_operand.vmem [shape: bf16[2,8,32], index: 2, kind: output, shape index: {}]
  %s3 = sld [smem:[#allocation0]]
  $region41: #{bert_base_uncased_forward.12} parent=0
    _
  %s5 = ssub.s32 1, %s3
  %s6 = scalar_select 0, %s5, %s3
  loop: start=0, step=1, limit=4
  $region2: #{bert_base_uncased_forward.12} parent=0 // loop_pre_header
    _
  $region3: #{bert_base_uncased_forward.12} parent=0 // loop_header
    %s8 = sphi 0, %s12
    %p9 = scmp.ge.s32.totalorder %s8, 4
    %s18 = sphi 0, %s20
    %s21 = sphi 0, %s18
    %s22 = sphi 0, %s21
    %s38 = sphi 0, %s22
    %s44 = sphi 0, %s46
    %s47 = sphi 0, %s44
    %s48 = sphi 0, %s47
    %s64 = sphi 0, %s48
    %s70 = sphi 0, %s72
    %s73 = sphi 0, %s70
    %s74 = sphi 0, %s73
    %s90 = sphi 0, %s74
  $region4: #{bert_base_uncased_forward.12} parent=0 // loop_header_branch
    %11 = sbr.rel (%p9) target = $region8
  $region5: #{bert_base_uncased_forward.12} parent=0 // loop_body
    %s13 = ssub.s32 %s8, 1
    %s14 = ssub.s32 %s8, 2
    %s15 = sadd.s32 %s8, 1
    %s16 = ssub.s32 %s8, %s15
    %p17 = scmp.eq.s32.totalorder %s16, 0
    %s19 = sadd.s32 %s18, 1
    %s20 = scalar_select %p17, %s18, %s19
    %p23 = pneg %p17
    %p24 = scmp.eq.s32.totalorder %s8, 1
    %p25 = por %p23, %p24
    %p26 = scmp.ne.s32.totalorder %s18, %s21
    %p27 = scmp.eq.s32.totalorder %s8, 0
    %p28 = por %p26, %p27
    %p29 = scmp.ne.s32.totalorder %s18, %s21
    %p30 = scmp.eq.s32.totalorder %s13, 1
    %p31 = por %p29, %p30
    %p32 = scmp.ne.s32.totalorder %s21, %s22
    %p33 = scmp.eq.s32.totalorder %s13, 0
    %p34 = por %p32, %p33
    %p35 = scmp.ne.s32.totalorder %s21, %s22
    %p36 = scmp.eq.s32.totalorder %s14, 1
    %p37 = por %p35, %p36
    %p39 = scmp.ne.s32.totalorder %s22, %s38
    %p40 = scmp.eq.s32.totalorder %s14, 0
    %p41 = por %p39, %p40
    %s42 = ssub.s32 %s8, %s15
    %p43 = scmp.eq.s32.totalorder %s42, 0
    %s45 = sadd.s32 %s44, 1
    %s46 = scalar_select %p43, %s44, %s45
    %p49 = pneg %p43
    %p50 = scmp.eq.s32.totalorder %s8, 1
    %p51 = por %p49, %p50
    %p52 = scmp.ne.s32.totalorder %s44, %s47
    %p53 = scmp.eq.s32.totalorder %s8, 0
    %p54 = por %p52, %p53
    %p55 = scmp.ne.s32.totalorder %s44, %s47
    %p56 = scmp.eq.s32.totalorder %s13, 1
    %p57 = por %p55, %p56
    %p58 = scmp.ne.s32.totalorder %s47, %s48
    %p59 = scmp.eq.s32.totalorder %s13, 0
    %p60 = por %p58, %p59
    %p61 = scmp.ne.s32.totalorder %s47, %s48
    %p62 = scmp.eq.s32.totalorder %s14, 1
    %p63 = por %p61, %p62
    %p65 = scmp.ne.s32.totalorder %s48, %s64
    %p66 = scmp.eq.s32.totalorder %s14, 0
    %p67 = por %p65, %p66
    %s68 = ssub.s32 %s8, %s15
    %p69 = scmp.eq.s32.totalorder %s68, 0
    %s71 = sadd.s32 %s70, 1
    %s72 = scalar_select %p69, %s70, %s71
    %p75 = pneg %p69
    %p76 = scmp.eq.s32.totalorder %s8, 1
    %p77 = por %p75, %p76
    %p78 = scmp.ne.s32.totalorder %s70, %s73
    %p79 = scmp.eq.s32.totalorder %s8, 0
    %p80 = por %p78, %p79
    %p81 = scmp.ne.s32.totalorder %s70, %s73
    %p82 = scmp.eq.s32.totalorder %s13, 1
    %p83 = por %p81, %p82
    %p84 = scmp.ne.s32.totalorder %s73, %s74
    %p85 = scmp.eq.s32.totalorder %s13, 0
    %p86 = por %p84, %p85
    %p87 = scmp.ne.s32.totalorder %s73, %s74
    %p88 = scmp.eq.s32.totalorder %s14, 1
    %p89 = por %p87, %p88
    %p91 = scmp.ne.s32.totalorder %s74, %s90
    %p92 = scmp.eq.s32.totalorder %s14, 0
    %p93 = por %p91, %p92
    %p94 = scmp.le.s32.totalorder 1, %s8
    %p95 = scmp.lt.s32.totalorder %s8, 3
    %p96 = pnand %p94, %p95
    %p97 = pneg %p96
    // Predicated region
    $region9: #{bert_base_uncased_forward.12} parent=5 // pred_check
      _
    $region10: #{bert_base_uncased_forward.12} parent=5 // pred_check_branch
      %99 = sbr.rel (%p96) target = $region12
    $region11: #{bert_base_uncased_forward.12} parent=5 // pred_region
      %s100 = ssub.s32 %s8, 1
    $region12: #{bert_base_uncased_forward.12} parent=5 // pred_fallthru
      _
    %p101 = scmp.lt.s32.totalorder %s8, 2
    // Predicated region
    $region13: #{bert_base_uncased_forward.12} parent=5 // pred_check
      %p102 = pneg %p101
    $region14: #{bert_base_uncased_forward.12} parent=5 // pred_check_branch
      %104 = sbr.rel (%p102) target = $region16
    $region15: #{bert_base_uncased_forward.12} parent=5 // pred_region
      // Predicated region
      $region17: #{bert_base_uncased_forward.12} parent=15 // pred_check
        %p105 = pneg %p28
      $region18: #{bert_base_uncased_forward.12} parent=15 // pred_check_branch
        %107 = sbr.rel (%p105) target = $region20
      $region19: #{bert_base_uncased_forward.12} parent=15 // pred_region
        %p108 = scmp.lt.s32.totalorder %s8, 1
        %s109 = scalar_select %p108, %s8, 1
        %s110 = smul.addr %s109, 4
        %s111 = scalar_lea.vmem %s0, %s110
      $region20: #{bert_base_uncased_forward.12} parent=15 // pred_fallthru
        _
      // Predicated region
      $region21: #{bert_base_uncased_forward.12} parent=15 // pred_check
        %p112 = pneg %p54
      $region22: #{bert_base_uncased_forward.12} parent=15 // pred_check_branch
        %114 = sbr.rel (%p112) target = $region24
      $region23: #{bert_base_uncased_forward.12} parent=15 // pred_region
        %p115 = scmp.lt.s32.totalorder %s8, 1
        %s116 = scalar_select %p115, %s8, 1
        %s117 = scalar_lea.vmem %s1, %s116
      $region24: #{bert_base_uncased_forward.12} parent=15 // pred_fallthru
        _
    $region16: #{bert_base_uncased_forward.12} parent=5 // pred_fallthru
      _
    %p118 = scmp.le.s32.totalorder 1, %s8
    %p119 = scmp.lt.s32.totalorder %s8, 3
    %p120 = pnand %p118, %p119
    %p121 = pneg %p120
    // Predicated region
    $region25: #{bert_base_uncased_forward.12} parent=5 // pred_check
      _
    $region26: #{bert_base_uncased_forward.12} parent=5 // pred_check_branch
      %123 = sbr.rel (%p120) target = $region28
    $region27: #{bert_base_uncased_forward.12} parent=5 // pred_region
      %s124 = ssub.s32 %s8, 1
      %p125 = scmp.lt.s32.totalorder %s13, 1
      %s126 = scalar_select %p125, %s13, 1
      %s127 = smul.addr %s126, 4
      %s128 = scalar_lea.vmem %s0, %s127
      %p129 = pneg %p34
      %p130 = pneg %p31
      %p131 = scmp.lt.s32.totalorder %s13, 1
      %s132 = scalar_select %p131, %s13, 1
      %s133 = scalar_lea.vmem %s1, %s132
      %p134 = pneg %p60
      %p135 = pneg %p57
      %p136 = pneg %p86
      %p137 = pneg %p83
      %p138 = scmp.lt.s32.totalorder %s13, 1
      %s139 = scalar_select %p138, %s13, 1
      %s140 = smul.addr %s139, 4
      %s141 = scalar_lea.vmem %s2, %s140
      %p142 = scmp.lt.s32.totalorder %s13, 1
      %s143 = scalar_select %p142, %s13, 1
      %s144 = smul.addr %s143, 4
      %s145 = scalar_lea.vmem %s0, %s144
      %p146 = scmp.lt.s32.totalorder %s13, 1
      %s147 = scalar_select %p146, %s13, 1
      %s148 = scalar_lea.vmem %s1, %s147
      %p149 = scmp.lt.s32.totalorder %s13, 1
      %s150 = scalar_select %p149, %s13, 1
      %s151 = smul.addr %s150, 4
      %s152 = scalar_lea.vmem %s2, %s151
      %v155 = vld [vmem:[%s145] sm:$0xf]
      %157 = vrot.lane.b32.xlu0 %v155, 120
      %v158 = vpop.permute.xlu0 %157
      %160 = vrot.lane.b32.xlu0 %v155, 112
      %v161 = vpop.permute.xlu0 %160
      %163 = vrot.lane.b32.xlu0 %v155, 104
      %v164 = vpop.permute.xlu0 %163
      %v166 = vmul.bf16 %v155, 1052065461
      %v167 = vmul.bf16 %v158, 1052065461
      %v168 = vmul.bf16 %v161, 1052065461
      %v169 = vmul.bf16 %v164, 1052065461
      %v170 = vld [vmem:[%s148] sm:$0x1]
      %v172 = vlaneseq
      %v173 = vshrl.u32 %v172, 7
      %v174 = vsub.s32 0, %v173
      %v175 = vrot.slane %v170, %v174
      %v177 = vunpack.c.l.b16 %v155
      %v178 = vpack.c.b16 %v177, %v177
      %179 = vrot.lane.b32.xlu0 %v178, 96
      %v180 = vpop.permute.xlu0 %179
      %vm181 = vcmask 64512
      %v183 = vsel %vm181, %v166, 0
      %v186 = vsel %vm181, %v180, 0
      %188 = vmatprep.subr.bf16.mxu0 0
      %189 = vmatpush1.bf16.xpose.msra.mxu0 %v186
      %190 = vmatprep.subr.bf16.mxu0 0
      %191 = vmatpush1.bf16.xpose.msra.mxu0 0
      %192 = vmatprep.subr.bf16.mxu0 0
      %193 = vmatpush1.bf16.xpose.msra.mxu0 0
      %194 = vmatprep.subr.bf16.mxu0 0
      %195 = vmatpush1.bf16.xpose.msra.mxu0 0
      %196 = vmatprep.subr.bf16.mxu0 0
      %197 = vmatpush1.bf16.xpose.msra.mxu0 0
      %198 = vmatprep.subr.bf16.mxu0 0
      %199 = vmatpush1.bf16.xpose.msra.mxu0 0
      %200 = vmatprep.subr.bf16.mxu0 0
      %201 = vmatpush1.bf16.xpose.msra.mxu0 0
      %202 = vmatprep.subr.bf16.mxu0 0
      %203 = vmatpush1.bf16.xpose.msra.mxu0 0
      %204 = vmatprep.subr.bf16.mxu0 0
      %205 = vmatpush1.bf16.xpose.msra.mxu0 0
      %206 = vmatprep.subr.bf16.mxu0 0
      %207 = vmatpush1.bf16.xpose.msra.mxu0 0
      %208 = vmatprep.subr.bf16.mxu0 0
      %209 = vmatpush1.bf16.xpose.msra.mxu0 0
      %210 = vmatprep.subr.bf16.mxu0 0
      %211 = vmatpush1.bf16.xpose.msra.mxu0 0
      %212 = vmatprep.subr.bf16.mxu0 0
      %213 = vmatpush1.bf16.xpose.msra.mxu0 0
      %214 = vmatprep.subr.bf16.mxu0 0
      %215 = vmatpush1.bf16.xpose.msra.mxu0 0
      %216 = vmatprep.subr.bf16.mxu0 0
      %217 = vmatpush1.bf16.xpose.msra.mxu0 0
      %218 = vmatprep.subr.bf16.mxu0 0
      %219 = vmatpush1.bf16.xpose.msra.mxu0 0
      %220 = vmatprep.mubr.bf16.mxu0 0
      %221 = vmatmul.mubr.bf16.gmra.mrb[0].mxu0 %v183
      %v222 = vpop.f32.mrb[0].mxu0
      %v223 = vadd.f32 %v175, %v222
      %v224 = vpop.f32.mrb[0].mxu0
      %v225 = vpop.f32.mrb[0].mxu0
      %v226 = vpop.f32.mrb[0].mxu0
      %227 = vdwg.mxu0
      %v228 = vunpack.c.l.b16 %v158
      %v229 = vpack.c.b16 %v228, %v228
      %230 = vrot.lane.b32.xlu0 %v229, 96
      %v231 = vpop.permute.xlu0 %230
      %v233 = vsel %vm181, %v167, 0
      %v236 = vsel %vm181, %v231, 0
      %238 = vmatprep.subr.bf16.mxu0 0
      %239 = vmatpush1.bf16.xpose.msra.mxu0 %v236
      %240 = vmatprep.subr.bf16.mxu0 0
      %241 = vmatpush1.bf16.xpose.msra.mxu0 0
      %242 = vmatprep.subr.bf16.mxu0 0
      %243 = vmatpush1.bf16.xpose.msra.mxu0 0
      %244 = vmatprep.subr.bf16.mxu0 0
      %245 = vmatpush1.bf16.xpose.msra.mxu0 0
      %246 = vmatprep.subr.bf16.mxu0 0
      %247 = vmatpush1.bf16.xpose.msra.mxu0 0
      %248 = vmatprep.subr.bf16.mxu0 0
      %249 = vmatpush1.bf16.xpose.msra.mxu0 0
      %250 = vmatprep.subr.bf16.mxu0 0
      %251 = vmatpush1.bf16.xpose.msra.mxu0 0
      %252 = vmatprep.subr.bf16.mxu0 0
      %253 = vmatpush1.bf16.xpose.msra.mxu0 0
      %254 = vmatprep.subr.bf16.mxu0 0
      %255 = vmatpush1.bf16.xpose.msra.mxu0 0
      %256 = vmatprep.subr.bf16.mxu0 0
      %257 = vmatpush1.bf16.xpose.msra.mxu0 0
      %258 = vmatprep.subr.bf16.mxu0 0
      %259 = vmatpush1.bf16.xpose.msra.mxu0 0
      %260 = vmatprep.subr.bf16.mxu0 0
      %261 = vmatpush1.bf16.xpose.msra.mxu0 0
      %262 = vmatprep.subr.bf16.mxu0 0
      %263 = vmatpush1.bf16.xpose.msra.mxu0 0
      %264 = vmatprep.subr.bf16.mxu0 0
      %265 = vmatpush1.bf16.xpose.msra.mxu0 0
      %266 = vmatprep.subr.bf16.mxu0 0
      %267 = vmatpush1.bf16.xpose.msra.mxu0 0
      %268 = vmatprep.subr.bf16.mxu0 0
      %269 = vmatpush1.bf16.xpose.msra.mxu0 0
      %270 = vmatprep.mubr.bf16.mxu0 0
      %271 = vmatmul.mubr.bf16.gmra.mrb[0].mxu0 %v233
      %v272 = vpop.f32.mrb[0].mxu0
      %v273 = vadd.f32 %v175, %v272
      %v274 = vpop.f32.mrb[0].mxu0
      %v275 = vpop.f32.mrb[0].mxu0
      %v276 = vpop.f32.mrb[0].mxu0
      %277 = vdwg.mxu0
      %v278 = vunpack.c.l.b16 %v161
      %v279 = vpack.c.b16 %v278, %v278
      %280 = vrot.lane.b32.xlu0 %v279, 96
      %v281 = vpop.permute.xlu0 %280
      %v283 = vsel %vm181, %v168, 0
      %v286 = vsel %vm181, %v281, 0
      %288 = vmatprep.subr.bf16.mxu0 0
      %289 = vmatpush1.bf16.xpose.msra.mxu0 %v286
      %290 = vmatprep.subr.bf16.mxu0 0
      %291 = vmatpush1.bf16.xpose.msra.mxu0 0
      %292 = vmatprep.subr.bf16.mxu0 0
      %293 = vmatpush1.bf16.xpose.msra.mxu0 0
      %294 = vmatprep.subr.bf16.mxu0 0
      %295 = vmatpush1.bf16.xpose.msra.mxu0 0
      %296 = vmatprep.subr.bf16.mxu0 0
      %297 = vmatpush1.bf16.xpose.msra.mxu0 0
      %298 = vmatprep.subr.bf16.mxu0 0
      %299 = vmatpush1.bf16.xpose.msra.mxu0 0
      %300 = vmatprep.subr.bf16.mxu0 0
      %301 = vmatpush1.bf16.xpose.msra.mxu0 0
      %302 = vmatprep.subr.bf16.mxu0 0
      %303 = vmatpush1.bf16.xpose.msra.mxu0 0
      %304 = vmatprep.subr.bf16.mxu0 0
      %305 = vmatpush1.bf16.xpose.msra.mxu0 0
      %306 = vmatprep.subr.bf16.mxu0 0
      %307 = vmatpush1.bf16.xpose.msra.mxu0 0
      %308 = vmatprep.subr.bf16.mxu0 0
      %309 = vmatpush1.bf16.xpose.msra.mxu0 0
      %310 = vmatprep.subr.bf16.mxu0 0
      %311 = vmatpush1.bf16.xpose.msra.mxu0 0
      %312 = vmatprep.subr.bf16.mxu0 0
      %313 = vmatpush1.bf16.xpose.msra.mxu0 0
      %314 = vmatprep.subr.bf16.mxu0 0
      %315 = vmatpush1.bf16.xpose.msra.mxu0 0
      %316 = vmatprep.subr.bf16.mxu0 0
      %317 = vmatpush1.bf16.xpose.msra.mxu0 0
      %318 = vmatprep.subr.bf16.mxu0 0
      %319 = vmatpush1.bf16.xpose.msra.mxu0 0
      %320 = vmatprep.mubr.bf16.mxu0 0
      %321 = vmatmul.mubr.bf16.gmra.mrb[0].mxu0 %v283
      %v322 = vpop.f32.mrb[0].mxu0
      %v323 = vadd.f32 %v175, %v322
      %v324 = vpop.f32.mrb[0].mxu0
      %v325 = vpop.f32.mrb[0].mxu0
      %v326 = vpop.f32.mrb[0].mxu0
      %327 = vdwg.mxu0
      %v328 = vunpack.c.l.b16 %v164
      %v329 = vpack.c.b16 %v328, %v328
      %330 = vrot.lane.b32.xlu0 %v329, 96
      %v331 = vpop.permute.xlu0 %330
      %v333 = vsel %vm181, %v169, 0
      %v336 = vsel %vm181, %v331, 0
      %338 = vmatprep.subr.bf16.mxu0 0
      %339 = vmatpush1.bf16.xpose.msra.mxu0 %v336
      %340 = vmatprep.subr.bf16.mxu0 0
      %341 = vmatpush1.bf16.xpose.msra.mxu0 0
      %342 = vmatprep.subr.bf16.mxu0 0
      %343 = vmatpush1.bf16.xpose.msra.mxu0 0
      %344 = vmatprep.subr.bf16.mxu0 0
      %345 = vmatpush1.bf16.xpose.msra.mxu0 0
      %346 = vmatprep.subr.bf16.mxu0 0
      %347 = vmatpush1.bf16.xpose.msra.mxu0 0
      %348 = vmatprep.subr.bf16.mxu0 0
      %349 = vmatpush1.bf16.xpose.msra.mxu0 0
      %350 = vmatprep.subr.bf16.mxu0 0
      %351 = vmatpush1.bf16.xpose.msra.mxu0 0
      %352 = vmatprep.subr.bf16.mxu0 0
      %353 = vmatpush1.bf16.xpose.msra.mxu0 0
      %354 = vmatprep.subr.bf16.mxu0 0
      %355 = vmatpush1.bf16.xpose.msra.mxu0 0
      %356 = vmatprep.subr.bf16.mxu0 0
      %357 = vmatpush1.bf16.xpose.msra.mxu0 0
      %358 = vmatprep.subr.bf16.mxu0 0
      %359 = vmatpush1.bf16.xpose.msra.mxu0 0
      %360 = vmatprep.subr.bf16.mxu0 0
      %361 = vmatpush1.bf16.xpose.msra.mxu0 0
      %362 = vmatprep.subr.bf16.mxu0 0
      %363 = vmatpush1.bf16.xpose.msra.mxu0 0
      %364 = vmatprep.subr.bf16.mxu0 0
      %365 = vmatpush1.bf16.xpose.msra.mxu0 0
      %366 = vmatprep.subr.bf16.mxu0 0
      %367 = vmatpush1.bf16.xpose.msra.mxu0 0
      %368 = vmatprep.subr.bf16.mxu0 0
      %369 = vmatpush1.bf16.xpose.msra.mxu0 0
      %370 = vmatprep.mubr.bf16.mxu0 0
      %371 = vmatmul.mubr.bf16.gmra.mrb[0].mxu0 %v333
      %v372 = vpop.f32.mrb[0].mxu0
      %v373 = vadd.f32 %v175, %v372
      %v374 = vpop.f32.mrb[0].mxu0
      %v375 = vpop.f32.mrb[0].mxu0
      %v376 = vpop.f32.mrb[0].mxu0
      %377 = vdwg.mxu0
      %v378 = vsel %vm181, %v223, -inf
      %379 = vmax.xlane.f32.xlu0 %v378
      %v380 = vpop.xlane.xlu0 %379
      %v381 = vsel %vm181, %v273, -inf
      %382 = vmax.xlane.f32.xlu0 %v381
      %v383 = vpop.xlane.xlu0 %382
      %v384 = vsel %vm181, %v323, -inf
      %385 = vmax.xlane.f32.xlu0 %v384
      %v386 = vpop.xlane.xlu0 %385
      %v387 = vsel %vm181, %v373, -inf
      %388 = vmax.xlane.f32.xlu0 %v387
      %v389 = vpop.xlane.xlu0 %388
      %v390 = vsub.f32 %v223, %v380
      %v391 = vsub.f32 %v273, %v383
      %v392 = vsub.f32 %v323, %v386
      %v393 = vsub.f32 %v373, %v389
      %v394 = vmul.f32 %v390, 1.442695
      %v395 = vpow.pop %v394
      %v396 = vmul.f32 %v391, 1.442695
      %v397 = vpow.pop %v396
      %v398 = vmul.f32 %v392, 1.442695
      %v399 = vpow.pop %v398
      %v400 = vmul.f32 %v393, 1.442695
      %v401 = vpow.pop %v400
      %v402 = vsel %vm181, %v395, 0.0
      %403 = vadd.xlane.f32.xlu0 %v402
      %v404 = vpop.xlane.xlu0 %403
      %v405 = vsel %vm181, %v397, 0.0
      %406 = vadd.xlane.f32.xlu0 %v405
      %v407 = vpop.xlane.xlu0 %406
      %v408 = vsel %vm181, %v399, 0.0
      %409 = vadd.xlane.f32.xlu0 %v408
      %v410 = vpop.xlane.xlu0 %409
      %v411 = vsel %vm181, %v401, 0.0
      %412 = vadd.xlane.f32.xlu0 %v411
      %v413 = vpop.xlane.xlu0 %412
      %v414 = vrcp.pop %v404
      %v415 = vrcp.pop %v407
      %v416 = vrcp.pop %v410
      %v417 = vrcp.pop %v413
      %v418 = vpack.c.bf16 %v395, %v395
      %v419 = vpack.c.bf16 %v397, %v397
      %v420 = vpack.c.bf16 %v399, %v399
      %v421 = vpack.c.bf16 %v401, %v401
      %422 = vrot.lane.b32.xlu0 %v178, 64
      %v423 = vpop.permute.xlu0 %422
      %v425 = vsel %vm181, %v418, 0
      %vm427 = vcmask 1043456
      %v429 = vsel %vm427, %v423, 0
      %431 = vmatprep.subr.bf16.mxu0 0
      %432 = vmatpush1.bf16.msra.mxu0 %v429
      %433 = vmatprep.subr.bf16.mxu0 0
      %434 = vmatpush1.bf16.msra.mxu0 0
      %435 = vmatprep.subr.bf16.mxu0 0
      %436 = vmatpush1.bf16.msra.mxu0 0
      %437 = vmatprep.subr.bf16.mxu0 0
      %438 = vmatpush1.bf16.msra.mxu0 0
      %439 = vmatprep.subr.bf16.mxu0 0
      %440 = vmatpush1.bf16.msra.mxu0 0
      %441 = vmatprep.subr.bf16.mxu0 0
      %442 = vmatpush1.bf16.msra.mxu0 0
      %443 = vmatprep.subr.bf16.mxu0 0
      %444 = vmatpush1.bf16.msra.mxu0 0
      %445 = vmatprep.subr.bf16.mxu0 0
      %446 = vmatpush1.bf16.msra.mxu0 0
      %447 = vmatprep.subr.bf16.mxu0 0
      %448 = vmatpush1.bf16.msra.mxu0 0
      %449 = vmatprep.subr.bf16.mxu0 0
      %450 = vmatpush1.bf16.msra.mxu0 0
      %451 = vmatprep.subr.bf16.mxu0 0
      %452 = vmatpush1.bf16.msra.mxu0 0
      %453 = vmatprep.subr.bf16.mxu0 0
      %454 = vmatpush1.bf16.msra.mxu0 0
      %455 = vmatprep.subr.bf16.mxu0 0
      %456 = vmatpush1.bf16.msra.mxu0 0
      %457 = vmatprep.subr.bf16.mxu0 0
      %458 = vmatpush1.bf16.msra.mxu0 0
      %459 = vmatprep.subr.bf16.mxu0 0
      %460 = vmatpush1.bf16.msra.mxu0 0
      %461 = vmatprep.subr.bf16.mxu0 0
      %462 = vmatpush1.bf16.msra.mxu0 0
      %463 = vmatprep.mubr.bf16.mxu0 0
      %464 = vmatmul.mubr.bf16.gmra.mrb[0].mxu0 %v425
      %v465 = vpop.f32.mrb[0].mxu0
      %v466 = vadd.f32 0.0, %v465
      %v467 = vpop.f32.mrb[0].mxu0
      %v468 = vpop.f32.mrb[0].mxu0
      %v469 = vpop.f32.mrb[0].mxu0
      %470 = vdwg.mxu0
      %471 = vrot.lane.b32.xlu0 %v229, 64
      %v472 = vpop.permute.xlu0 %471
      %v474 = vsel %vm181, %v419, 0
      %v477 = vsel %vm427, %v472, 0
      %479 = vmatprep.subr.bf16.mxu0 0
      %480 = vmatpush1.bf16.msra.mxu0 %v477
      %481 = vmatprep.subr.bf16.mxu0 0
      %482 = vmatpush1.bf16.msra.mxu0 0
      %483 = vmatprep.subr.bf16.mxu0 0
      %484 = vmatpush1.bf16.msra.mxu0 0
      %485 = vmatprep.subr.bf16.mxu0 0
      %486 = vmatpush1.bf16.msra.mxu0 0
      %487 = vmatprep.subr.bf16.mxu0 0
      %488 = vmatpush1.bf16.msra.mxu0 0
      %489 = vmatprep.subr.bf16.mxu0 0
      %490 = vmatpush1.bf16.msra.mxu0 0
      %491 = vmatprep.subr.bf16.mxu0 0
      %492 = vmatpush1.bf16.msra.mxu0 0
      %493 = vmatprep.subr.bf16.mxu0 0
      %494 = vmatpush1.bf16.msra.mxu0 0
      %495 = vmatprep.subr.bf16.mxu0 0
      %496 = vmatpush1.bf16.msra.mxu0 0
      %497 = vmatprep.subr.bf16.mxu0 0
      %498 = vmatpush1.bf16.msra.mxu0 0
      %499 = vmatprep.subr.bf16.mxu0 0
      %500 = vmatpush1.bf16.msra.mxu0 0
      %501 = vmatprep.subr.bf16.mxu0 0
      %502 = vmatpush1.bf16.msra.mxu0 0
      %503 = vmatprep.subr.bf16.mxu0 0
      %504 = vmatpush1.bf16.msra.mxu0 0
      %505 = vmatprep.subr.bf16.mxu0 0
      %506 = vmatpush1.bf16.msra.mxu0 0
      %507 = vmatprep.subr.bf16.mxu0 0
      %508 = vmatpush1.bf16.msra.mxu0 0
      %509 = vmatprep.subr.bf16.mxu0 0
      %510 = vmatpush1.bf16.msra.mxu0 0
      %511 = vmatprep.mubr.bf16.mxu0 0
      %512 = vmatmul.mubr.bf16.gmra.mrb[0].mxu0 %v474
      %v513 = vpop.f32.mrb[0].mxu0
      %v514 = vadd.f32 0.0, %v513
      %v515 = vpop.f32.mrb[0].mxu0
      %v516 = vpop.f32.mrb[0].mxu0
      %v517 = vpop.f32.mrb[0].mxu0
      %518 = vdwg.mxu0
      %519 = vrot.lane.b32.xlu0 %v279, 64
      %v520 = vpop.permute.xlu0 %519
      %v522 = vsel %vm181, %v420, 0
      %v525 = vsel %vm427, %v520, 0
      %527 = vmatprep.subr.bf16.mxu0 0
      %528 = vmatpush1.bf16.msra.mxu0 %v525
      %529 = vmatprep.subr.bf16.mxu0 0
      %530 = vmatpush1.bf16.msra.mxu0 0
      %531 = vmatprep.subr.bf16.mxu0 0
      %532 = vmatpush1.bf16.msra.mxu0 0
      %533 = vmatprep.subr.bf16.mxu0 0
      %534 = vmatpush1.bf16.msra.mxu0 0
      %535 = vmatprep.subr.bf16.mxu0 0
      %536 = vmatpush1.bf16.msra.mxu0 0
      %537 = vmatprep.subr.bf16.mxu0 0
      %538 = vmatpush1.bf16.msra.mxu0 0
      %539 = vmatprep.subr.bf16.mxu0 0
      %540 = vmatpush1.bf16.msra.mxu0 0
      %541 = vmatprep.subr.bf16.mxu0 0
      %542 = vmatpush1.bf16.msra.mxu0 0
      %543 = vmatprep.subr.bf16.mxu0 0
      %544 = vmatpush1.bf16.msra.mxu0 0
      %545 = vmatprep.subr.bf16.mxu0 0
      %546 = vmatpush1.bf16.msra.mxu0 0
      %547 = vmatprep.subr.bf16.mxu0 0
      %548 = vmatpush1.bf16.msra.mxu0 0
      %549 = vmatprep.subr.bf16.mxu0 0
      %550 = vmatpush1.bf16.msra.mxu0 0
      %551 = vmatprep.subr.bf16.mxu0 0
      %552 = vmatpush1.bf16.msra.mxu0 0
      %553 = vmatprep.subr.bf16.mxu0 0
      %554 = vmatpush1.bf16.msra.mxu0 0
      %555 = vmatprep.subr.bf16.mxu0 0
      %556 = vmatpush1.bf16.msra.mxu0 0
      %557 = vmatprep.subr.bf16.mxu0 0
      %558 = vmatpush1.bf16.msra.mxu0 0
      %559 = vmatprep.mubr.bf16.mxu0 0
      %560 = vmatmul.mubr.bf16.gmra.mrb[0].mxu0 %v522
      %v561 = vpop.f32.mrb[0].mxu0
      %v562 = vadd.f32 0.0, %v561
      %v563 = vpop.f32.mrb[0].mxu0
      %v564 = vpop.f32.mrb[0].mxu0
      %v565 = vpop.f32.mrb[0].mxu0
      %566 = vdwg.mxu0
      %567 = vrot.lane.b32.xlu0 %v329, 64
      %v568 = vpop.permute.xlu0 %567
      %v570 = vsel %vm181, %v421, 0
      %v573 = vsel %vm427, %v568, 0
      %575 = vmatprep.subr.bf16.mxu0 0
      %576 = vmatpush1.bf16.msra.mxu0 %v573
      %577 = vmatprep.subr.bf16.mxu0 0
      %578 = vmatpush1.bf16.msra.mxu0 0
      %579 = vmatprep.subr.bf16.mxu0 0
      %580 = vmatpush1.bf16.msra.mxu0 0
      %581 = vmatprep.subr.bf16.mxu0 0
      %582 = vmatpush1.bf16.msra.mxu0 0
      %583 = vmatprep.subr.bf16.mxu0 0
      %584 = vmatpush1.bf16.msra.mxu0 0
      %585 = vmatprep.subr.bf16.mxu0 0
      %586 = vmatpush1.bf16.msra.mxu0 0
      %587 = vmatprep.subr.bf16.mxu0 0
      %588 = vmatpush1.bf16.msra.mxu0 0
      %589 = vmatprep.subr.bf16.mxu0 0
      %590 = vmatpush1.bf16.msra.mxu0 0
      %591 = vmatprep.subr.bf16.mxu0 0
      %592 = vmatpush1.bf16.msra.mxu0 0
      %593 = vmatprep.subr.bf16.mxu0 0
      %594 = vmatpush1.bf16.msra.mxu0 0
      %595 = vmatprep.subr.bf16.mxu0 0
      %596 = vmatpush1.bf16.msra.mxu0 0
      %597 = vmatprep.subr.bf16.mxu0 0
      %598 = vmatpush1.bf16.msra.mxu0 0
      %599 = vmatprep.subr.bf16.mxu0 0
      %600 = vmatpush1.bf16.msra.mxu0 0
      %601 = vmatprep.subr.bf16.mxu0 0
      %602 = vmatpush1.bf16.msra.mxu0 0
      %603 = vmatprep.subr.bf16.mxu0 0
      %604 = vmatpush1.bf16.msra.mxu0 0
      %605 = vmatprep.subr.bf16.mxu0 0
      %606 = vmatpush1.bf16.msra.mxu0 0
      %607 = vmatprep.mubr.bf16.mxu0 0
      %608 = vmatmul.mubr.bf16.gmra.mrb[0].mxu0 %v570
      %v609 = vpop.f32.mrb[0].mxu0
      %v610 = vadd.f32 0.0, %v609
      %v611 = vpop.f32.mrb[0].mxu0
      %v612 = vpop.f32.mrb[0].mxu0
      %v613 = vpop.f32.mrb[0].mxu0
      %614 = vdwg.mxu0
      %v615 = vmul.f32 %v466, %v414
      %v616 = vmul.f32 %v514, %v415
      %v617 = vmul.f32 %v562, %v416
      %v618 = vmul.f32 %v610, %v417
      %620 = vrot.lane.b32.xlu0 %v616, 8
      %v621 = vpop.permute.xlu0 %620
      %624 = vrot.lane.b32.xlu0 %v617, 16
      %v625 = vpop.permute.xlu0 %624
      %628 = vrot.lane.b32.xlu0 %v618, 24
      %v629 = vpop.permute.xlu0 %628
      %v631 = vsel %vm181, %v615, %v621
      %vm632 = vcmask 130048
      %v633 = vsel %vm632, %v631, %v625
      %vm634 = vcmask 195584
      %v635 = vsel %vm634, %v633, %v629
      %v636 = vpack.c.bf16 %v635, %v635
      %vm637 = vcmask 257024
      %638 = vst.msk [vmem:[%s152] sm:$0xf] %vm637, %v636
      %p639 = scmp.lt.s32.totalorder %s13, 1
      %s640 = scalar_select %p639, %s13, 1
      %s641 = smul.addr %s640, 4
      %s642 = scalar_lea.vmem %s2, %s641
      // Predicated region
      $region29: #{bert_base_uncased_forward.12} parent=27 // pred_check
        %p643 = pneg %p83
      $region30: #{bert_base_uncased_forward.12} parent=27 // pred_check_branch
        %645 = sbr.rel (%p643) target = $region32
      $region31: #{bert_base_uncased_forward.12} parent=27 // pred_region
        _
      $region32: #{bert_base_uncased_forward.12} parent=27 // pred_fallthru
        _
    $region28: #{bert_base_uncased_forward.12} parent=5 // pred_fallthru
      _
    %p646 = scmp.le.s32.totalorder 2, %s8
    // Predicated region
    $region33: #{bert_base_uncased_forward.12} parent=5 // pred_check
      %p647 = pneg %p646
    $region34: #{bert_base_uncased_forward.12} parent=5 // pred_check_branch
      %649 = sbr.rel (%p647) target = $region36
    $region35: #{bert_base_uncased_forward.12} parent=5 // pred_region
      %s650 = ssub.s32 %s8, 2
      // Predicated region
      $region37: #{bert_base_uncased_forward.12} parent=35 // pred_check
        %p651 = pneg %p89
      $region38: #{bert_base_uncased_forward.12} parent=35 // pred_check_branch
        %653 = sbr.rel (%p651) target = $region40
      $region39: #{bert_base_uncased_forward.12} parent=35 // pred_region
        %p654 = scmp.lt.s32.totalorder %s14, 1
        %s655 = scalar_select %p654, %s14, 1
        %s656 = smul.addr %s655, 4
        %s657 = scalar_lea.vmem %s2, %s656
      $region40: #{bert_base_uncased_forward.12} parent=35 // pred_fallthru
        _
    $region36: #{bert_base_uncased_forward.12} parent=5 // pred_fallthru
      _
  $region6: #{bert_base_uncased_forward.12} parent=0 // loop_footer
    %s12 = sadd.s32 1, %s8
  $region7: #{bert_base_uncased_forward.12} parent=0 // loop_footer_branch
    %7 = sbr.rel target = $region3
  $region8: #{bert_base_uncased_forward.12} parent=0 // loop_exit
    _

// kernel: bert_base_uncased_forward.19
$region0: #{bert_base_uncased_forward.19}
  #allocation0 [shape = 'u32[]', space=smem, size = 0x4, offset = 0x4, fixed_abs, tag = 'smem constant byte address 0x4 - core index']
  #allocation1 [shape = 'u32[144,128]{1,0:T(1,128)}', space=vmem, size = 0x12000, scoped, tag = 'internal scratch']
  %s0 = inlined_call_operand.vmem [shape: bf16[2,32], index: 0, kind: input, shape index: {}]
  %s1 = inlined_call_operand.vmem [shape: bf16[32,32], index: 1, kind: input, shape index: {}]
  %s2 = inlined_call_operand.vmem [shape: f32[1,32], index: 2, kind: input, shape index: {}]
  %s3 = inlined_call_operand.vmem [shape: bf16[32,128], index: 3, kind: input, shape index: {}]
  %s4 = inlined_call_operand.vmem [shape: f32[1,128], index: 4, kind: input, shape index: {}]
  %s5 = inlined_call_operand.hbm [shape: f32[2,128], index: 5, kind: output, shape index: {}]
  %s6 = sld [smem:[#allocation0]]
  $region30: #{bert_base_uncased_forward.19} parent=0
    _
  %s8 = ssub.s32 1, %s6
  %s9 = scalar_select 0, %s8, %s6
  $region1: #{bert_base_uncased_forward.19} parent=0
    #allocation2 [shape = 'u8[1024]{0}', space=vmem, size = 0x400, scoped, tag = 'output window, operand 0, single buffered']
    #allocation3 [shape = 's32[1]{0}', space=sflag, size = 0x4, scoped, tag = 'scoped memory for bert_base_uncased_forward.19']
    %10 = vsyncpa [#allocation3], 0
    // Predicated region
    $region2: #{bert_base_uncased_forward.19} parent=1 // pred_check
      _
    $region3: #{bert_base_uncased_forward.19} parent=1 // pred_check_branch
      %12 = sbr.rel (0) target = $region5
    $region4: #{bert_base_uncased_forward.19} parent=1 // pred_region
      _
    $region5: #{bert_base_uncased_forward.19} parent=1 // pred_fallthru
      _
    // Predicated region
    $region6: #{bert_base_uncased_forward.19} parent=1 // pred_check
      _
    $region7: #{bert_base_uncased_forward.19} parent=1 // pred_check_branch
      %14 = sbr.rel (0) target = $region9
    $region8: #{bert_base_uncased_forward.19} parent=1 // pred_region
      _
    $region9: #{bert_base_uncased_forward.19} parent=1 // pred_fallthru
      _
    // Predicated region
    $region10: #{bert_base_uncased_forward.19} parent=1 // pred_check
      _
    $region11: #{bert_base_uncased_forward.19} parent=1 // pred_check_branch
      %16 = sbr.rel (0) target = $region13
    $region12: #{bert_base_uncased_forward.19} parent=1 // pred_region
      _
    $region13: #{bert_base_uncased_forward.19} parent=1 // pred_fallthru
      _
    // Predicated region
    $region14: #{bert_base_uncased_forward.19} parent=1 // pred_check
      _
    $region15: #{bert_base_uncased_forward.19} parent=1 // pred_check_branch
      %18 = sbr.rel (0) target = $region17
    $region16: #{bert_base_uncased_forward.19} parent=1 // pred_region
      _
    $region17: #{bert_base_uncased_forward.19} parent=1 // pred_fallthru
      _
    // Predicated region
    $region18: #{bert_base_uncased_forward.19} parent=1 // pred_check
      _
    $region19: #{bert_base_uncased_forward.19} parent=1 // pred_check_branch
      %20 = sbr.rel (0) target = $region21
    $region20: #{bert_base_uncased_forward.19} parent=1 // pred_region
      _
    $region21: #{bert_base_uncased_forward.19} parent=1 // pred_fallthru
      _
    %v22 = vld [vmem:[%s0] sm:$0x1]
    %v23 = vld [vmem:[%s1] sm:$0xf]
    %v24 = vld [vmem:[%s1 + $0x4] sm:$0xf]
    %v25 = vld [vmem:[%s1 + $0x8] sm:$0xf]
    %v26 = vld [vmem:[%s1 + $0xc] sm:$0xf]
    %v27 = vld [vmem:[%s2] sm:$0x1]
    %v29 = vlaneseq
    %v30 = vshrl.u32 %v29, 7
    %v31 = vsub.s32 0, %v30
    %v32 = vrot.slane %v27, %v31
    %v38 = vunpack.c.l.b16 %v23
    %v39 = vunpack.c.l.b16 %v24
    %v40 = vunpack.c.l.b16 %v25
    %v41 = vunpack.c.l.b16 %v26
    %v42 = vpack.c.b16 %v39, %v38
    %v43 = vpack.c.b16 %v41, %v40
    %vm46 = vcmask 261120
    %v48 = vsel %vm46, %v22, 0
    %50 = vmatprep.subr.bf16.mxu0 0
    %51 = vmatpush1.bf16.msra.mxu0 %v42
    %52 = vmatprep.subr.bf16.mxu0 0
    %53 = vmatpush1.bf16.msra.mxu0 %v43
    %54 = vmatprep.subr.bf16.mxu0 0
    %55 = vmatpush1.bf16.msra.mxu0 0
    %56 = vmatprep.subr.bf16.mxu0 0
    %57 = vmatpush1.bf16.msra.mxu0 0
    %58 = vmatprep.subr.bf16.mxu0 0
    %59 = vmatpush1.bf16.msra.mxu0 0
    %60 = vmatprep.subr.bf16.mxu0 0
    %61 = vmatpush1.bf16.msra.mxu0 0
    %62 = vmatprep.subr.bf16.mxu0 0
    %63 = vmatpush1.bf16.msra.mxu0 0
    %64 = vmatprep.subr.bf16.mxu0 0
    %65 = vmatpush1.bf16.msra.mxu0 0
    %66 = vmatprep.subr.bf16.mxu0 0
    %67 = vmatpush1.bf16.msra.mxu0 0
    %68 = vmatprep.subr.bf16.mxu0 0
    %69 = vmatpush1.bf16.msra.mxu0 0
    %70 = vmatprep.subr.bf16.mxu0 0
    %71 = vmatpush1.bf16.msra.mxu0 0
    %72 = vmatprep.subr.bf16.mxu0 0
    %73 = vmatpush1.bf16.msra.mxu0 0
    %74 = vmatprep.subr.bf16.mxu0 0
    %75 = vmatpush1.bf16.msra.mxu0 0
    %76 = vmatprep.subr.bf16.mxu0 0
    %77 = vmatpush1.bf16.msra.mxu0 0
    %78 = vmatprep.subr.bf16.mxu0 0
    %79 = vmatpush1.bf16.msra.mxu0 0
    %80 = vmatprep.subr.bf16.mxu0 0
    %81 = vmatpush1.bf16.msra.mxu0 0
    %82 = vmatprep.mubr.bf16.mxu0 0
    %83 = vmatmul.mubr.bf16.gmra.mrb[0].mxu0 %v48
    %v84 = vpop.f32.mrb[0].mxu0
    %v85 = vadd.f32 %v32, %v84
    %v86 = vpop.f32.mrb[0].mxu0
    %v87 = vpop.f32.mrb[0].mxu0
    %v88 = vpop.f32.mrb[0].mxu0
    %89 = vdwg.mxu0
    %v90 = vtanh.pop %v85
    %v91 = vpack.c.bf16 %v90, %v90
    %v92 = vld [vmem:[%s3] sm:$0xf]
    %v93 = vld [vmem:[%s3 + $0x4] sm:$0xf]
    %v94 = vld [vmem:[%s3 + $0x8] sm:$0xf]
    %v95 = vld [vmem:[%s3 + $0xc] sm:$0xf]
    %v96 = vld [vmem:[%s4] sm:$0x1]
    %v98 = vlaneseq
    %v99 = vshrl.u32 %v98, 7
    %v100 = vsub.s32 0, %v99
    %v101 = vrot.slane %v96, %v100
    %v107 = vunpack.c.l.b16 %v92
    %v108 = vunpack.c.l.b16 %v93
    %v109 = vunpack.c.l.b16 %v94
    %v110 = vunpack.c.l.b16 %v95
    %v111 = vpack.c.b16 %v108, %v107
    %v112 = vpack.c.b16 %v110, %v109
    %v116 = vsel %vm46, %v91, 0
    %118 = vmatprep.subr.bf16.mxu0 0
    %119 = vmatpush1.bf16.msra.mxu0 %v111
    %120 = vmatprep.subr.bf16.mxu0 0
    %121 = vmatpush1.bf16.msra.mxu0 %v112
    %122 = vmatprep.subr.bf16.mxu0 0
    %123 = vmatpush1.bf16.msra.mxu0 0
    %124 = vmatprep.subr.bf16.mxu0 0
    %125 = vmatpush1.bf16.msra.mxu0 0
    %126 = vmatprep.subr.bf16.mxu0 0
    %127 = vmatpush1.bf16.msra.mxu0 0
    %128 = vmatprep.subr.bf16.mxu0 0
    %129 = vmatpush1.bf16.msra.mxu0 0
    %130 = vmatprep.subr.bf16.mxu0 0
    %131 = vmatpush1.bf16.msra.mxu0 0
    %132 = vmatprep.subr.bf16.mxu0 0
    %133 = vmatpush1.bf16.msra.mxu0 0
    %134 = vmatprep.subr.bf16.mxu0 0
    %135 = vmatpush1.bf16.msra.mxu0 0
    %136 = vmatprep.subr.bf16.mxu0 0
    %137 = vmatpush1.bf16.msra.mxu0 0
    %138 = vmatprep.subr.bf16.mxu0 0
    %139 = vmatpush1.bf16.msra.mxu0 0
    %140 = vmatprep.subr.bf16.mxu0 0
    %141 = vmatpush1.bf16.msra.mxu0 0
    %142 = vmatprep.subr.bf16.mxu0 0
    %143 = vmatpush1.bf16.msra.mxu0 0
    %144 = vmatprep.subr.bf16.mxu0 0
    %145 = vmatpush1.bf16.msra.mxu0 0
    %146 = vmatprep.subr.bf16.mxu0 0
    %147 = vmatpush1.bf16.msra.mxu0 0
    %148 = vmatprep.subr.bf16.mxu0 0
    %149 = vmatpush1.bf16.msra.mxu0 0
    %150 = vmatprep.mubr.bf16.mxu0 0
    %151 = vmatmul.mubr.bf16.gmra.mrb[0].mxu0 %v116
    %v152 = vpop.f32.mrb[0].mxu0
    %v153 = vadd.f32 %v101, %v152
    %v154 = vpop.f32.mrb[0].mxu0
    %v155 = vpop.f32.mrb[0].mxu0
    %v156 = vpop.f32.mrb[0].mxu0
    %157 = vdwg.mxu0
    %158 = vst [vmem:[#allocation2] sm:$0x3] %v153
    // Predicated region
    $region22: #{bert_base_uncased_forward.19} parent=1 // pred_check
      _
    $region23: #{bert_base_uncased_forward.19} parent=1 // pred_check_branch
      %160 = sbr.rel (0) target = $region25
    $region24: #{bert_base_uncased_forward.19} parent=1 // pred_region
      %s162 = ssub.s32 32, 32
      %163 = vsyncadd [#allocation3], %s162
      %s165 = sshll.u32 [#allocation2], 4
      %s166 = int_to_ptr.vmem [resolvable:$true] %s165
      %168 = dma.vmem_to_hbm [thread:$0]  %s166, 32, %s5, [#allocation3]
    $region25: #{bert_base_uncased_forward.19} parent=1 // pred_fallthru
      _
    // Predicated region
    $region26: #{bert_base_uncased_forward.19} parent=1 // pred_check
      _
    $region27: #{bert_base_uncased_forward.19} parent=1 // pred_check_branch
      %170 = sbr.rel (0) target = $region29
    $region28: #{bert_base_uncased_forward.19} parent=1 // pred_region
      %171 = dma.done [#allocation3], 32
    $region29: #{bert_base_uncased_forward.19} parent=1 // pred_fallthru
      _
    %172 = vsyncpa [#allocation3], 1

// kernel: bert_base_uncased_forward.14
$region0: #{bert_base_uncased_forward.14}
  #allocation0 [shape = 'u32[]', space=smem, size = 0x4, offset = 0x4, fixed_abs, tag = 'smem constant byte address 0x4 - core index']
  #allocation1 [shape = 'u32[144,128]{1,0:T(1,128)}', space=vmem, size = 0x12000, scoped, tag = 'internal scratch']
  %s0 = inlined_call_operand.vmem [shape: bf16[16,32], index: 0, kind: input, shape index: {}]
  %s1 = inlined_call_operand.vmem [shape: bf16[32,128], index: 1, kind: input, shape index: {}]
  %s2 = inlined_call_operand.vmem [shape: f32[1,128], index: 2, kind: input, shape index: {}]
  %s3 = inlined_call_operand.vmem [shape: bf16[128,32], index: 3, kind: input, shape index: {}]
  %s4 = inlined_call_operand.vmem [shape: f32[1,32], index: 4, kind: input, shape index: {}]
  %s5 = inlined_call_operand.vmem [shape: f32[1,32], index: 5, kind: input, shape index: {}]
  %s6 = inlined_call_operand.vmem [shape: f32[1,32], index: 6, kind: input, shape index: {}]
  %s7 = inlined_call_operand.vmem [shape: bf16[16,32], index: 7, kind: output, shape index: {}]
  %s8 = sld [smem:[#allocation0]]
  $region38: #{bert_base_uncased_forward.14} parent=0
    _
  %s10 = ssub.s32 1, %s8
  %s11 = scalar_select 0, %s10, %s8
  // Predicated region
  $region2: #{bert_base_uncased_forward.14} parent=0 // pred_check
    _
  $region3: #{bert_base_uncased_forward.14} parent=0 // pred_check_branch
    %13 = sbr.rel (0) target = $region5
  $region4: #{bert_base_uncased_forward.14} parent=0 // pred_region
    _
  $region5: #{bert_base_uncased_forward.14} parent=0 // pred_fallthru
    _
  // Predicated region
  $region6: #{bert_base_uncased_forward.14} parent=0 // pred_check
    _
  $region7: #{bert_base_uncased_forward.14} parent=0 // pred_check_branch
    %15 = sbr.rel (0) target = $region9
  $region8: #{bert_base_uncased_forward.14} parent=0 // pred_region
    _
  $region9: #{bert_base_uncased_forward.14} parent=0 // pred_fallthru
    _
  // Predicated region
  $region10: #{bert_base_uncased_forward.14} parent=0 // pred_check
    _
  $region11: #{bert_base_uncased_forward.14} parent=0 // pred_check_branch
    %17 = sbr.rel (0) target = $region13
  $region12: #{bert_base_uncased_forward.14} parent=0 // pred_region
    _
  $region13: #{bert_base_uncased_forward.14} parent=0 // pred_fallthru
    _
  // Predicated region
  $region14: #{bert_base_uncased_forward.14} parent=0 // pred_check
    _
  $region15: #{bert_base_uncased_forward.14} parent=0 // pred_check_branch
    %19 = sbr.rel (0) target = $region17
  $region16: #{bert_base_uncased_forward.14} parent=0 // pred_region
    _
  $region17: #{bert_base_uncased_forward.14} parent=0 // pred_fallthru
    _
  // Predicated region
  $region18: #{bert_base_uncased_forward.14} parent=0 // pred_check
    _
  $region19: #{bert_base_uncased_forward.14} parent=0 // pred_check_branch
    %21 = sbr.rel (0) target = $region21
  $region20: #{bert_base_uncased_forward.14} parent=0 // pred_region
    _
  $region21: #{bert_base_uncased_forward.14} parent=0 // pred_fallthru
    _
  // Predicated region
  $region22: #{bert_base_uncased_forward.14} parent=0 // pred_check
    _
  $region23: #{bert_base_uncased_forward.14} parent=0 // pred_check_branch
    %23 = sbr.rel (0) target = $region25
  $region24: #{bert_base_uncased_forward.14} parent=0 // pred_region
    _
  $region25: #{bert_base_uncased_forward.14} parent=0 // pred_fallthru
    _
  // Predicated region
  $region26: #{bert_base_uncased_forward.14} parent=0 // pred_check
    _
  $region27: #{bert_base_uncased_forward.14} parent=0 // pred_check_branch
    %25 = sbr.rel (0) target = $region29
  $region28: #{bert_base_uncased_forward.14} parent=0 // pred_region
    _
  $region29: #{bert_base_uncased_forward.14} parent=0 // pred_fallthru
    _
  %v27 = vld [vmem:[%s0] sm:$0xf]
  %v28 = vld [vmem:[%s0 + $0x4] sm:$0xf]
  %v29 = vld [vmem:[%s1] sm:$0xf]
  %v30 = vld [vmem:[%s1 + $0x4] sm:$0xf]
  %v31 = vld [vmem:[%s1 + $0x8] sm:$0xf]
  %v32 = vld [vmem:[%s1 + $0xc] sm:$0xf]
  %v33 = vld [vmem:[%s2] sm:$0x1]
  %v35 = vlaneseq
  %v36 = vshrl.u32 %v35, 7
  %v37 = vsub.s32 0, %v36
  %v38 = vrot.slane %v33, %v37
  %v42 = vunpack.c.l.b16 %v27
  %v43 = vunpack.c.l.b16 %v28
  %v44 = vpack.c.b16 %v43, %v42
  %v49 = vunpack.c.l.b16 %v29
  %v50 = vunpack.c.l.b16 %v30
  %v51 = vunpack.c.l.b16 %v31
  %v52 = vunpack.c.l.b16 %v32
  %v53 = vpack.c.b16 %v50, %v49
  %v54 = vpack.c.b16 %v52, %v51
  %vm57 = vcmask 261120
  %v59 = vsel %vm57, %v44, 0
  %61 = vmatprep.subr.bf16.mxu0 0
  %62 = vmatpush1.bf16.msra.mxu0 %v53
  %63 = vmatprep.subr.bf16.mxu0 0
  %64 = vmatpush1.bf16.msra.mxu0 %v54
  %65 = vmatprep.subr.bf16.mxu0 0
  %66 = vmatpush1.bf16.msra.mxu0 0
  %67 = vmatprep.subr.bf16.mxu0 0
  %68 = vmatpush1.bf16.msra.mxu0 0
  %69 = vmatprep.subr.bf16.mxu0 0
  %70 = vmatpush1.bf16.msra.mxu0 0
  %71 = vmatprep.subr.bf16.mxu0 0
  %72 = vmatpush1.bf16.msra.mxu0 0
  %73 = vmatprep.subr.bf16.mxu0 0
  %74 = vmatpush1.bf16.msra.mxu0 0
  %75 = vmatprep.subr.bf16.mxu0 0
  %76 = vmatpush1.bf16.msra.mxu0 0
  %77 = vmatprep.subr.bf16.mxu0 0
  %78 = vmatpush1.bf16.msra.mxu0 0
  %79 = vmatprep.subr.bf16.mxu0 0
  %80 = vmatpush1.bf16.msra.mxu0 0
  %81 = vmatprep.subr.bf16.mxu0 0
  %82 = vmatpush1.bf16.msra.mxu0 0
  %83 = vmatprep.subr.bf16.mxu0 0
  %84 = vmatpush1.bf16.msra.mxu0 0
  %85 = vmatprep.subr.bf16.mxu0 0
  %86 = vmatpush1.bf16.msra.mxu0 0
  %87 = vmatprep.subr.bf16.mxu0 0
  %88 = vmatpush1.bf16.msra.mxu0 0
  %89 = vmatprep.subr.bf16.mxu0 0
  %90 = vmatpush1.bf16.msra.mxu0 0
  %91 = vmatprep.subr.bf16.mxu0 0
  %92 = vmatpush1.bf16.msra.mxu0 0
  %93 = vmatprep.mubr.bf16.mxu0 0
  %94 = vmatmul.mubr.bf16.gmra.mrb[0].mxu0 %v59
  %v95 = vpop.f32.mrb[0].mxu0
  %v96 = vadd.f32 %v38, %v95
  %v97 = vpop.f32.mrb[0].mxu0
  %v98 = vpop.f32.mrb[0].mxu0
  %v99 = vadd.f32 %v38, %v98
  %v100 = vpop.f32.mrb[0].mxu0
  %101 = vdwg.mxu0
  %v102 = vmul.f32 %v96, 0.5
  %v103 = vmul.f32 %v99, 0.5
  %v104 = vmul.f32 %v96, 0.70710677
  %v105 = vmul.f32 %v99, 0.70710677
  %v106 = verf.f32.pop %v104
  %v107 = verf.f32.pop %v105
  %v108 = vadd.f32 %v106, 1.0
  %v109 = vadd.f32 %v107, 1.0
  %v110 = vmul.f32 %v102, %v108
  %v111 = vmul.f32 %v103, %v109
  %v112 = vpack.c.bf16 %v111, %v110
  %v113 = vld [vmem:[%s3] sm:$0xf]
  %v114 = vld [vmem:[%s3 + $0x4] sm:$0xf]
  %v115 = vld [vmem:[%s3 + $0x8] sm:$0xf]
  %v116 = vld [vmem:[%s3 + $0xc] sm:$0xf]
  %v117 = vld [vmem:[%s3 + $0x10] sm:$0xf]
  %v118 = vld [vmem:[%s3 + $0x14] sm:$0xf]
  %v119 = vld [vmem:[%s3 + $0x18] sm:$0xf]
  %v120 = vld [vmem:[%s3 + $0x1c] sm:$0xf]
  %v121 = vld [vmem:[%s3 + $0x20] sm:$0xf]
  %v122 = vld [vmem:[%s3 + $0x24] sm:$0xf]
  %v123 = vld [vmem:[%s3 + $0x28] sm:$0xf]
  %v124 = vld [vmem:[%s3 + $0x2c] sm:$0xf]
  %v125 = vld [vmem:[%s3 + $0x30] sm:$0xf]
  %v126 = vld [vmem:[%s3 + $0x34] sm:$0xf]
  %v127 = vld [vmem:[%s3 + $0x38] sm:$0xf]
  %v128 = vld [vmem:[%s3 + $0x3c] sm:$0xf]
  %v129 = vld [vmem:[%s4] sm:$0x1]
  %v131 = vlaneseq
  %v132 = vshrl.u32 %v131, 7
  %v133 = vsub.s32 0, %v132
  %v134 = vrot.slane %v129, %v133
  %v152 = vunpack.c.l.b16 %v113
  %v153 = vunpack.c.l.b16 %v114
  %v154 = vunpack.c.l.b16 %v115
  %v155 = vunpack.c.l.b16 %v116
  %v156 = vunpack.c.l.b16 %v117
  %v157 = vunpack.c.l.b16 %v118
  %v158 = vunpack.c.l.b16 %v119
  %v159 = vunpack.c.l.b16 %v120
  %v160 = vunpack.c.l.b16 %v121
  %v161 = vunpack.c.l.b16 %v122
  %v162 = vunpack.c.l.b16 %v123
  %v163 = vunpack.c.l.b16 %v124
  %v164 = vunpack.c.l.b16 %v125
  %v165 = vunpack.c.l.b16 %v126
  %v166 = vunpack.c.l.b16 %v127
  %v167 = vunpack.c.l.b16 %v128
  %v168 = vpack.c.b16 %v153, %v152
  %v169 = vpack.c.b16 %v155, %v154
  %v170 = vpack.c.b16 %v157, %v156
  %v171 = vpack.c.b16 %v159, %v158
  %v172 = vpack.c.b16 %v161, %v160
  %v173 = vpack.c.b16 %v163, %v162
  %v174 = vpack.c.b16 %v165, %v164
  %v175 = vpack.c.b16 %v167, %v166
  %184 = vmatprep.subr.bf16.mxu0 0
  %185 = vmatpush1.bf16.msra.mxu0 %v168
  %186 = vmatprep.subr.bf16.mxu0 0
  %187 = vmatpush1.bf16.msra.mxu0 %v169
  %188 = vmatprep.subr.bf16.mxu0 0
  %189 = vmatpush1.bf16.msra.mxu0 %v170
  %190 = vmatprep.subr.bf16.mxu0 0
  %191 = vmatpush1.bf16.msra.mxu0 %v171
  %192 = vmatprep.subr.bf16.mxu0 0
  %193 = vmatpush1.bf16.msra.mxu0 %v172
  %194 = vmatprep.subr.bf16.mxu0 0
  %195 = vmatpush1.bf16.msra.mxu0 %v173
  %196 = vmatprep.subr.bf16.mxu0 0
  %197 = vmatpush1.bf16.msra.mxu0 %v174
  %198 = vmatprep.subr.bf16.mxu0 0
  %199 = vmatpush1.bf16.msra.mxu0 %v175
  %200 = vmatprep.subr.bf16.mxu0 0
  %201 = vmatpush1.bf16.msra.mxu0 0
  %202 = vmatprep.subr.bf16.mxu0 0
  %203 = vmatpush1.bf16.msra.mxu0 0
  %204 = vmatprep.subr.bf16.mxu0 0
  %205 = vmatpush1.bf16.msra.mxu0 0
  %206 = vmatprep.subr.bf16.mxu0 0
  %207 = vmatpush1.bf16.msra.mxu0 0
  %208 = vmatprep.subr.bf16.mxu0 0
  %209 = vmatpush1.bf16.msra.mxu0 0
  %210 = vmatprep.subr.bf16.mxu0 0
  %211 = vmatpush1.bf16.msra.mxu0 0
  %212 = vmatprep.subr.bf16.mxu0 0
  %213 = vmatpush1.bf16.msra.mxu0 0
  %214 = vmatprep.subr.bf16.mxu0 0
  %215 = vmatpush1.bf16.msra.mxu0 0
  %216 = vmatprep.mubr.bf16.mxu0 0
  %217 = vmatmul.mubr.bf16.gmra.mrb[0].mxu0 %v112
  %v218 = vpop.f32.mrb[0].mxu0
  %v219 = vadd.f32 %v134, %v218
  %v220 = vpop.f32.mrb[0].mxu0
  %v221 = vpop.f32.mrb[0].mxu0
  %v222 = vadd.f32 %v134, %v221
  %v223 = vpop.f32.mrb[0].mxu0
  %224 = vdwg.mxu0
  %v225 = vunpack.c.l.bf16 %v27
  %v226 = vunpack.c.l.bf16 %v28
  %v227 = vadd.f32 %v219, %v225
  %v228 = vadd.f32 %v222, %v226
  %v229 = vsel %vm57, %v227, 0.0
  %230 = vadd.xlane.f32.xlu0 %v229
  %v231 = vpop.xlane.xlu0 %230
  %v232 = vsel %vm57, %v228, 0.0
  %233 = vadd.xlane.f32.xlu0 %v232
  %v234 = vpop.xlane.xlu0 %233
  %v235 = vrcp.pop 32.0
  %v236 = vmul.f32 %v231, %v235
  %v237 = vmul.f32 %v234, %v235
  %v238 = vsub.f32 %v227, %v236
  %v239 = vsub.f32 %v228, %v237
  %v240 = vmul.f32 %v238, %v238
  %v241 = vmul.f32 %v239, %v239
  %v242 = vsel %vm57, %v240, 0.0
  %243 = vadd.xlane.f32.xlu0 %v242
  %v244 = vpop.xlane.xlu0 %243
  %v245 = vsel %vm57, %v241, 0.0
  %246 = vadd.xlane.f32.xlu0 %v245
  %v247 = vpop.xlane.xlu0 %246
  %v248 = vmul.f32 %v244, %v235
  %v249 = vmul.f32 %v247, %v235
  %v250 = vadd.f32 %v248, 1e-12
  %v251 = vadd.f32 %v249, 1e-12
  %v252 = vrsqrt.pop %v250
  %v253 = vrsqrt.pop %v251
  %v254 = vmul.f32 %v238, %v252
  %v255 = vmul.f32 %v239, %v253
  %v256 = vld [vmem:[%s5] sm:$0x1]
  %v258 = vlaneseq
  %v259 = vshrl.u32 %v258, 7
  %v260 = vsub.s32 0, %v259
  %v261 = vrot.slane %v256, %v260
  %v263 = vmul.f32 %v254, %v261
  %v264 = vmul.f32 %v255, %v261
  %v265 = vld [vmem:[%s6] sm:$0x1]
  %v267 = vlaneseq
  %v268 = vshrl.u32 %v267, 7
  %v269 = vsub.s32 0, %v268
  %v270 = vrot.slane %v265, %v269
  %v272 = vadd.f32 %v263, %v270
  %v273 = vadd.f32 %v264, %v270
  %v274 = vpack.c.bf16 %v273, %v272
  %v276 = vunpack.c.l.b16 %v274
  %v277 = vunpack.c.h.b16 %v274
  %v278 = vpack.c.b16 %v276, %v276
  %v279 = vpack.c.b16 %v277, %v277
  %vm282 = vcmask 257024
  %283 = vst.msk [vmem:[%s7] sm:$0xf] %vm282, %v278
  %284 = vst.msk [vmem:[%s7 + $0x4] sm:$0xf] %vm282, %v279
  // Predicated region
  $region30: #{bert_base_uncased_forward.14} parent=0 // pred_check
    _
  $region31: #{bert_base_uncased_forward.14} parent=0 // pred_check_branch
    %286 = sbr.rel (0) target = $region33
  $region32: #{bert_base_uncased_forward.14} parent=0 // pred_region
    _
  $region33: #{bert_base_uncased_forward.14} parent=0 // pred_fallthru
    _
  // Predicated region
  $region34: #{bert_base_uncased_forward.14} parent=0 // pred_check
    _
  $region35: #{bert_base_uncased_forward.14} parent=0 // pred_check_branch
    %288 = sbr.rel (0) target = $region37
  $region36: #{bert_base_uncased_forward.14} parent=0 // pred_region
    _
  $region37: #{bert_base_uncased_forward.14} parent=0 // pred_fallthru
    _

</llo_original>
